<compile_context>
chip_gen: v7x
topology: tpu7x:2x2x1
jax: 0.10.0
libtpu: 0.0.40
codegen_flags: <defaults>
</compile_context>

<pallas_src>
import functools

import jax
import jax.numpy as jnp
from jax.experimental import pallas as pl
from jax.experimental.pallas import tpu as pltpu


def policy_kernel(
    x_ref,                                                  # (TB, D_in) batch tile
    w1_ref, b1_ref, w2_ref, b2_ref, w3_ref, b3_ref,         # actor (pi)
    scale_ref, bias_ref,                                    # action_scale / action_bias
    qw1_ref, qb1_ref, qw2_ref, qb2_ref, qw3_ref, qb3_ref,   # critic (qf)
    aq_out_ref,                                             # (TB, D_out + 1) lane-dense output
    xa_ref,                                                 # VMEM scratch (TB, D_in + D_out)
    *, d_in, d_out,
):
    x = x_ref[...]

    # ---- actor: Linear -> ReLU -> Linear -> ReLU -> Linear -> Tanh ----
    h = jnp.dot(x, w1_ref[...], preferred_element_type=jnp.float32) + b1_ref[...]
    h = jnp.maximum(h, 0.0)
    h = jnp.dot(h, w2_ref[...], preferred_element_type=jnp.float32) + b2_ref[...]
    h = jnp.maximum(h, 0.0)
    a = jnp.tanh(jnp.dot(h, w3_ref[...], preferred_element_type=jnp.float32) + b3_ref[...])
    a = a * scale_ref[...] + bias_ref[...]

    # ---- critic on concat([x, a]): assemble the concat in VMEM scratch,
    # single matmul against the original concatenated first-layer weight ----
    xa_ref[:, :d_in] = x
    xa_ref[:, d_in:] = a
    g = jnp.dot(xa_ref[...], qw1_ref[...], preferred_element_type=jnp.float32) + qb1_ref[...]
    g = jnp.maximum(g, 0.0)
    g = jnp.dot(g, qw2_ref[...], preferred_element_type=jnp.float32) + qb2_ref[...]
    g = jnp.maximum(g, 0.0)
    q = jnp.dot(g, qw3_ref[...], preferred_element_type=jnp.float32) + qb3_ref[...]

    # ---- lane-dense combined output: actions in [0, d_out), q in lane d_out ----
    aq_out_ref[:, :d_out] = a.astype(aq_out_ref.dtype)
    aq_out_ref[:, d_out:] = q.astype(aq_out_ref.dtype)


def _resident_spec(shape):
    # Whole array as one VMEM block, same block at every grid step (weights
    # stay VMEM-resident across the batch-tile loop).
    return pl.BlockSpec(shape, lambda i: (0,) * len(shape))


def actor_critic_forward(x, params, *, block_b=128):
    """Runs the whole forward pass inside a single batch-tiled Pallas kernel call."""
    B, d_in = x.shape
    d_out = params["w3"].shape[1]
    tb = min(block_b, B)

    weights = (
        params["w1"], params["b1"], params["w2"], params["b2"], params["w3"], params["b3"],
        params["action_scale"], params["action_bias"],
        params["qw1"], params["qb1"], params["qw2"], params["qb2"], params["qw3"], params["qb3"],
    )

    kernel = functools.partial(policy_kernel, d_in=d_in, d_out=d_out)

    fn = pl.pallas_call(
        kernel,
        out_shape=jax.ShapeDtypeStruct((B, d_out + 1), x.dtype),
        grid=(pl.cdiv(B, tb),),
        in_specs=[pl.BlockSpec((tb, d_in), lambda i: (i, 0))]
        + [_resident_spec(w.shape) for w in weights],
        out_specs=pl.BlockSpec((tb, d_out + 1), lambda i: (i, 0)),
        scratch_shapes=[pltpu.VMEM((tb, d_in + d_out), jnp.float32)],
        compiler_params=pltpu.CompilerParams(
            dimension_semantics=("parallel",),          # shards batch tiles across v7x's 2 TCs
            vmem_limit_bytes=32 * 1024 * 1024,          # well inside v7x's 64 MiB physical VMEM
        ),
    )
    aq = fn(x, *weights)
    return aq[:, :d_out], aq[:, d_out:]


def init_params(key, input_dim, output_dim, hidden_dims, action_high, action_low):
    """Deterministic PyTorch-style (uniform +/- 1/sqrt(fan_in)) initialization."""
    def linear(key, fan_in, fan_out):
        kw, kb = jax.random.split(key)
        bound = 1.0 / jnp.sqrt(jnp.float32(fan_in))
        w = jax.random.uniform(kw, (fan_in, fan_out), jnp.float32, -bound, bound)
        b = jax.random.uniform(kb, (1, fan_out), jnp.float32, -bound, bound)
        return w, b

    h1, h2 = hidden_dims
    keys = jax.random.split(key, 6)

    # actor: input_dim -> h1 -> h2 -> output_dim
    w1, b1 = linear(keys[0], input_dim, h1)
    w2, b2 = linear(keys[1], h1, h2)
    w3, b3 = linear(keys[2], h2, output_dim)

    # critic: (input_dim + output_dim) -> h1 -> h2 -> 1
    qw1, qb1 = linear(keys[3], input_dim + output_dim, h1)
    qw2, qb2 = linear(keys[4], h1, h2)
    qw3, qb3 = linear(keys[5], h2, 1)

    return dict(
        w1=w1, b1=b1, w2=w2, b2=b2, w3=w3, b3=b3,
        qw1=qw1, qb1=qb1, qw2=qw2, qb2=qb2, qw3=qw3, qb3=qb3,
        action_scale=((action_high - action_low) / 2.0).reshape(1, -1),
        action_bias=((action_high + action_low) / 2.0).reshape(1, -1),
    )


def reference_forward(x, p):
    """Pure-JAX reference mirroring the PyTorch forward."""
    h = jnp.maximum(x @ p["w1"] + p["b1"], 0.0)
    h = jnp.maximum(h @ p["w2"] + p["b2"], 0.0)
    a = jnp.tanh(h @ p["w3"] + p["b3"]) * p["action_scale"] + p["action_bias"]
    xa = jnp.concatenate([x, a], axis=1)
    g = jnp.maximum(xa @ p["qw1"] + p["qb1"], 0.0)
    g = jnp.maximum(g @ p["qw2"] + p["qb2"], 0.0)
    q = g @ p["qw3"] + p["qb3"]
    return a, q


if __name__ == "__main__":
    # Small-but-tileable shapes: batch=256 (2 batch tiles of 128), obs dim=16,
    # action dim=4, hidden=[32, 32], ReLU activations.
    B, D_IN, D_OUT = 256, 16, 4
    HIDDEN = [32, 32]

    key = jax.random.PRNGKey(0)
    k_x, k_p = jax.random.split(key, 2)

    action_high = jnp.full((D_OUT,), 2.0, jnp.float32)
    action_low = jnp.full((D_OUT,), -2.0, jnp.float32)
    params = init_params(k_p, D_IN, D_OUT, HIDDEN, action_high, action_low)

    x = jax.random.normal(k_x, (B, D_IN), jnp.float32)
    # The `a` argument to the PyTorch forward() only acts as a flag (it is
    # immediately overwritten by pi(f)); we always take the a-is-not-None branch,
    # so no action input is needed by the math.

    a_out, q_out = actor_critic_forward(x, params)
    a_out = jax.block_until_ready(a_out)
    q_out = jax.block_until_ready(q_out)

    a_ref, q_ref = reference_forward(x, params)
    assert a_out.shape == (B, D_OUT) and q_out.shape == (B, 1)
    assert jnp.allclose(a_out, a_ref, atol=1e-5, rtol=1e-5)
    assert jnp.allclose(q_out, q_ref, atol=1e-5, rtol=1e-5)

    print("KERNEL_OK")
</pallas_src>

<mosaic_0001>
module attributes {stable_mosaic.version = 11 : i64} {
  func.func @policy_kernel(%arg0: i32, %arg1: memref<128x16xf32, #tpu.memory_space<vmem>>, %arg2: memref<16x32xf32, #tpu.memory_space<vmem>>, %arg3: memref<1x32xf32, #tpu.memory_space<vmem>>, %arg4: memref<32x32xf32, #tpu.memory_space<vmem>>, %arg5: memref<1x32xf32, #tpu.memory_space<vmem>>, %arg6: memref<32x4xf32, #tpu.memory_space<vmem>>, %arg7: memref<1x4xf32, #tpu.memory_space<vmem>>, %arg8: memref<1x4xf32, #tpu.memory_space<vmem>>, %arg9: memref<1x4xf32, #tpu.memory_space<vmem>>, %arg10: memref<20x32xf32, #tpu.memory_space<vmem>>, %arg11: memref<1x32xf32, #tpu.memory_space<vmem>>, %arg12: memref<32x32xf32, #tpu.memory_space<vmem>>, %arg13: memref<1x32xf32, #tpu.memory_space<vmem>>, %arg14: memref<32x1xf32, #tpu.memory_space<vmem>>, %arg15: memref<1x1xf32, #tpu.memory_space<vmem>>, %arg16: memref<128x5xf32, #tpu.memory_space<vmem>>, %arg17: memref<128x20xf32, #tpu.memory_space<vmem>>) attributes {dimension_semantics = [#tpu.dimension_semantics<parallel>], iteration_bounds = array<i64: 2>, scalar_prefetch = 0 : i64, scratch_operands = 1 : i64, tpu.core_type = #tpu.core_type<tc>, window_params = [{transform_indices = @transform_0, window_bounds = array<i64: 128, 16>}, {pipeline_mode = #tpu.pipeline_mode<synchronous>, transform_indices = @transform_1, window_bounds = array<i64: 16, 32>}, {pipeline_mode = #tpu.pipeline_mode<synchronous>, transform_indices = @transform_2, window_bounds = array<i64: 1, 32>}, {pipeline_mode = #tpu.pipeline_mode<synchronous>, transform_indices = @transform_3, window_bounds = array<i64: 32, 32>}, {pipeline_mode = #tpu.pipeline_mode<synchronous>, transform_indices = @transform_4, window_bounds = array<i64: 1, 32>}, {pipeline_mode = #tpu.pipeline_mode<synchronous>, transform_indices = @transform_5, window_bounds = array<i64: 32, 4>}, {pipeline_mode = #tpu.pipeline_mode<synchronous>, transform_indices = @transform_6, window_bounds = array<i64: 1, 4>}, {pipeline_mode = #tpu.pipeline_mode<synchronous>, transform_indices = @transform_7, window_bounds = array<i64: 1, 4>}, {pipeline_mode = #tpu.pipeline_mode<synchronous>, transform_indices = @transform_8, window_bounds = array<i64: 1, 4>}, {pipeline_mode = #tpu.pipeline_mode<synchronous>, transform_indices = @transform_9, window_bounds = array<i64: 20, 32>}, {pipeline_mode = #tpu.pipeline_mode<synchronous>, transform_indices = @transform_10, window_bounds = array<i64: 1, 32>}, {pipeline_mode = #tpu.pipeline_mode<synchronous>, transform_indices = @transform_11, window_bounds = array<i64: 32, 32>}, {pipeline_mode = #tpu.pipeline_mode<synchronous>, transform_indices = @transform_12, window_bounds = array<i64: 1, 32>}, {pipeline_mode = #tpu.pipeline_mode<synchronous>, transform_indices = @transform_13, window_bounds = array<i64: 32, 1>}, {pipeline_mode = #tpu.pipeline_mode<synchronous>, transform_indices = @transform_14, window_bounds = array<i64: 1, 1>}, {transform_indices = @transform_15, window_bounds = array<i64: 128, 5>}]} {
    %c0 = arith.constant 0 : index
    %c0_0 = arith.constant 0 : index
    %0 = vector.load %arg1[%c0, %c0_0] : memref<128x16xf32, #tpu.memory_space<vmem>>, vector<128x16xf32>
    %c0_1 = arith.constant 0 : index
    %c0_2 = arith.constant 0 : index
    %1 = vector.load %arg2[%c0_1, %c0_2] : memref<16x32xf32, #tpu.memory_space<vmem>>, vector<16x32xf32>
    %cst = arith.constant dense<0.000000e+00> : vector<128x32xf32>
    %2 = tpu.matmul %0, %1, %cst {dimension_numbers = #tpu.dot_dimension_numbers<[1], [0], [0], [1], [0, 0, 1, 1], [], []>} : vector<128x16xf32>, vector<16x32xf32>, vector<128x32xf32> -> vector<128x32xf32>
    %c0_3 = arith.constant 0 : index
    %c0_4 = arith.constant 0 : index
    %3 = vector.load %arg3[%c0_3, %c0_4] : memref<1x32xf32, #tpu.memory_space<vmem>>, vector<1x32xf32>
    %4 = vector.broadcast %3 : vector<1x32xf32> to vector<128x32xf32>
    %5 = arith.addf %2, %4 : vector<128x32xf32>
    %cst_5 = arith.constant 0.000000e+00 : f32
    %6 = vector.broadcast %cst_5 : f32 to vector<128x32xf32>
    %7 = arith.maximumf %5, %6 : vector<128x32xf32>
    %c0_6 = arith.constant 0 : index
    %c0_7 = arith.constant 0 : index
    %8 = vector.load %arg4[%c0_6, %c0_7] : memref<32x32xf32, #tpu.memory_space<vmem>>, vector<32x32xf32>
    %cst_8 = arith.constant dense<0.000000e+00> : vector<128x32xf32>
    %9 = tpu.matmul %7, %8, %cst_8 {dimension_numbers = #tpu.dot_dimension_numbers<[1], [0], [0], [1], [0, 0, 1, 1], [], []>} : vector<128x32xf32>, vector<32x32xf32>, vector<128x32xf32> -> vector<128x32xf32>
    %c0_9 = arith.constant 0 : index
    %c0_10 = arith.constant 0 : index
    %10 = vector.load %arg5[%c0_9, %c0_10] : memref<1x32xf32, #tpu.memory_space<vmem>>, vector<1x32xf32>
    %11 = vector.broadcast %10 : vector<1x32xf32> to vector<128x32xf32>
    %12 = arith.addf %9, %11 : vector<128x32xf32>
    %cst_11 = arith.constant 0.000000e+00 : f32
    %13 = vector.broadcast %cst_11 : f32 to vector<128x32xf32>
    %14 = arith.maximumf %12, %13 : vector<128x32xf32>
    %c0_12 = arith.constant 0 : index
    %c0_13 = arith.constant 0 : index
    %15 = vector.load %arg6[%c0_12, %c0_13] : memref<32x4xf32, #tpu.memory_space<vmem>>, vector<32x4xf32>
    %cst_14 = arith.constant dense<0.000000e+00> : vector<128x4xf32>
    %16 = tpu.matmul %14, %15, %cst_14 {dimension_numbers = #tpu.dot_dimension_numbers<[1], [0], [0], [1], [0, 0, 1, 1], [], []>} : vector<128x32xf32>, vector<32x4xf32>, vector<128x4xf32> -> vector<128x4xf32>
    %c0_15 = arith.constant 0 : index
    %c0_16 = arith.constant 0 : index
    %17 = vector.load %arg7[%c0_15, %c0_16] : memref<1x4xf32, #tpu.memory_space<vmem>>, vector<1x4xf32>
    %18 = vector.broadcast %17 : vector<1x4xf32> to vector<128x4xf32>
    %19 = arith.addf %16, %18 : vector<128x4xf32>
    %20 = math.tanh %19 : vector<128x4xf32>
    %c0_17 = arith.constant 0 : index
    %c0_18 = arith.constant 0 : index
    %21 = vector.load %arg8[%c0_17, %c0_18] : memref<1x4xf32, #tpu.memory_space<vmem>>, vector<1x4xf32>
    %22 = vector.broadcast %21 : vector<1x4xf32> to vector<128x4xf32>
    %23 = arith.mulf %20, %22 : vector<128x4xf32>
    %c0_19 = arith.constant 0 : index
    %c0_20 = arith.constant 0 : index
    %24 = vector.load %arg9[%c0_19, %c0_20] : memref<1x4xf32, #tpu.memory_space<vmem>>, vector<1x4xf32>
    %25 = vector.broadcast %24 : vector<1x4xf32> to vector<128x4xf32>
    %26 = arith.addf %23, %25 : vector<128x4xf32>
    %c0_21 = arith.constant 0 : index
    %c0_22 = arith.constant 0 : index
    %27 = vector.load %arg17[%c0_21, %c0_22] : memref<128x20xf32, #tpu.memory_space<vmem>>, vector<128x16xf32>
    tpu.vector_store %arg17[%c0_21, %c0_22], %0 {strides = array<i32>} : memref<128x20xf32, #tpu.memory_space<vmem>>, vector<128x16xf32>,
    %c0_23 = arith.constant 0 : index
    %c16 = arith.constant 16 : index
    %28 = vector.load %arg17[%c0_23, %c16] : memref<128x20xf32, #tpu.memory_space<vmem>>, vector<128x4xf32>
    tpu.vector_store %arg17[%c0_23, %c16], %26 {strides = array<i32>} : memref<128x20xf32, #tpu.memory_space<vmem>>, vector<128x4xf32>,
    %c0_24 = arith.constant 0 : index
    %c0_25 = arith.constant 0 : index
    %29 = vector.load %arg17[%c0_24, %c0_25] : memref<128x20xf32, #tpu.memory_space<vmem>>, vector<128x20xf32>
    %c0_26 = arith.constant 0 : index
    %c0_27 = arith.constant 0 : index
    %30 = vector.load %arg10[%c0_26, %c0_27] : memref<20x32xf32, #tpu.memory_space<vmem>>, vector<20x32xf32>
    %cst_28 = arith.constant dense<0.000000e+00> : vector<128x32xf32>
    %31 = tpu.matmul %29, %30, %cst_28 {dimension_numbers = #tpu.dot_dimension_numbers<[1], [0], [0], [1], [0, 0, 1, 1], [], []>} : vector<128x20xf32>, vector<20x32xf32>, vector<128x32xf32> -> vector<128x32xf32>
    %c0_29 = arith.constant 0 : index
    %c0_30 = arith.constant 0 : index
    %32 = vector.load %arg11[%c0_29, %c0_30] : memref<1x32xf32, #tpu.memory_space<vmem>>, vector<1x32xf32>
    %33 = vector.broadcast %32 : vector<1x32xf32> to vector<128x32xf32>
    %34 = arith.addf %31, %33 : vector<128x32xf32>
    %cst_31 = arith.constant 0.000000e+00 : f32
    %35 = vector.broadcast %cst_31 : f32 to vector<128x32xf32>
    %36 = arith.maximumf %34, %35 : vector<128x32xf32>
    %c0_32 = arith.constant 0 : index
    %c0_33 = arith.constant 0 : index
    %37 = vector.load %arg12[%c0_32, %c0_33] : memref<32x32xf32, #tpu.memory_space<vmem>>, vector<32x32xf32>
    %cst_34 = arith.constant dense<0.000000e+00> : vector<128x32xf32>
    %38 = tpu.matmul %36, %37, %cst_34 {dimension_numbers = #tpu.dot_dimension_numbers<[1], [0], [0], [1], [0, 0, 1, 1], [], []>} : vector<128x32xf32>, vector<32x32xf32>, vector<128x32xf32> -> vector<128x32xf32>
    %c0_35 = arith.constant 0 : index
    %c0_36 = arith.constant 0 : index
    %39 = vector.load %arg13[%c0_35, %c0_36] : memref<1x32xf32, #tpu.memory_space<vmem>>, vector<1x32xf32>
    %40 = vector.broadcast %39 : vector<1x32xf32> to vector<128x32xf32>
    %41 = arith.addf %38, %40 : vector<128x32xf32>
    %cst_37 = arith.constant 0.000000e+00 : f32
    %42 = vector.broadcast %cst_37 : f32 to vector<128x32xf32>
    %43 = arith.maximumf %41, %42 : vector<128x32xf32>
    %c0_38 = arith.constant 0 : index
    %c0_39 = arith.constant 0 : index
    %44 = vector.load %arg14[%c0_38, %c0_39] : memref<32x1xf32, #tpu.memory_space<vmem>>, vector<32x1xf32>
    %cst_40 = arith.constant dense<0.000000e+00> : vector<128x1xf32>
    %45 = tpu.matmul %43, %44, %cst_40 {dimension_numbers = #tpu.dot_dimension_numbers<[1], [0], [0], [1], [0, 0, 1, 1], [], []>} : vector<128x32xf32>, vector<32x1xf32>, vector<128x1xf32> -> vector<128x1xf32>
    %c0_41 = arith.constant 0 : index
    %c0_42 = arith.constant 0 : index
    %46 = vector.load %arg15[%c0_41, %c0_42] : memref<1x1xf32, #tpu.memory_space<vmem>>, vector<1x1xf32>
    %47 = vector.broadcast %46 : vector<1x1xf32> to vector<128x1xf32>
    %48 = arith.addf %45, %47 : vector<128x1xf32>
    %c0_43 = arith.constant 0 : index
    %c0_44 = arith.constant 0 : index
    %49 = vector.load %arg16[%c0_43, %c0_44] : memref<128x5xf32, #tpu.memory_space<vmem>>, vector<128x4xf32>
    tpu.vector_store %arg16[%c0_43, %c0_44], %26 {strides = array<i32>} : memref<128x5xf32, #tpu.memory_space<vmem>>, vector<128x4xf32>,
    %c0_45 = arith.constant 0 : index
    %c4 = arith.constant 4 : index
    %50 = vector.load %arg16[%c0_45, %c4] : memref<128x5xf32, #tpu.memory_space<vmem>>, vector<128x1xf32>
    tpu.vector_store %arg16[%c0_45, %c4], %48 {strides = array<i32>} : memref<128x5xf32, #tpu.memory_space<vmem>>, vector<128x1xf32>,
    return
  }
  func.func @transform_0(%arg0: i32) -> (i32, i32) {
    %c0_i32 = arith.constant 0 : i32
    %c0_i32_0 = arith.constant 0 : i32
    return %arg0, %c0_i32 : i32, i32
  }
  func.func @transform_1(%arg0: i32) -> (i32, i32) {
    %c0_i32 = arith.constant 0 : i32
    %c0_i32_0 = arith.constant 0 : i32
    %c0_i32_1 = arith.constant 0 : i32
    return %c0_i32, %c0_i32_0 : i32, i32
  }
  func.func @transform_2(%arg0: i32) -> (i32, i32) {
    %c0_i32 = arith.constant 0 : i32
    %c0_i32_0 = arith.constant 0 : i32
    %c0_i32_1 = arith.constant 0 : i32
    return %c0_i32, %c0_i32_0 : i32, i32
  }
  func.func @transform_3(%arg0: i32) -> (i32, i32) {
    %c0_i32 = arith.constant 0 : i32
    %c0_i32_0 = arith.constant 0 : i32
    %c0_i32_1 = arith.constant 0 : i32
    return %c0_i32, %c0_i32_0 : i32, i32
  }
  func.func @transform_4(%arg0: i32) -> (i32, i32) {
    %c0_i32 = arith.constant 0 : i32
    %c0_i32_0 = arith.constant 0 : i32
    %c0_i32_1 = arith.constant 0 : i32
    return %c0_i32, %c0_i32_0 : i32, i32
  }
  func.func @transform_5(%arg0: i32) -> (i32, i32) {
    %c0_i32 = arith.constant 0 : i32
    %c0_i32_0 = arith.constant 0 : i32
    %c0_i32_1 = arith.constant 0 : i32
    return %c0_i32, %c0_i32_0 : i32, i32
  }
  func.func @transform_6(%arg0: i32) -> (i32, i32) {
    %c0_i32 = arith.constant 0 : i32
    %c0_i32_0 = arith.constant 0 : i32
    %c0_i32_1 = arith.constant 0 : i32
    return %c0_i32, %c0_i32_0 : i32, i32
  }
  func.func @transform_7(%arg0: i32) -> (i32, i32) {
    %c0_i32 = arith.constant 0 : i32
    %c0_i32_0 = arith.constant 0 : i32
    %c0_i32_1 = arith.constant 0 : i32
    return %c0_i32, %c0_i32_0 : i32, i32
  }
  func.func @transform_8(%arg0: i32) -> (i32, i32) {
    %c0_i32 = arith.constant 0 : i32
    %c0_i32_0 = arith.constant 0 : i32
    %c0_i32_1 = arith.constant 0 : i32
    return %c0_i32, %c0_i32_0 : i32, i32
  }
  func.func @transform_9(%arg0: i32) -> (i32, i32) {
    %c0_i32 = arith.constant 0 : i32
    %c0_i32_0 = arith.constant 0 : i32
    %c0_i32_1 = arith.constant 0 : i32
    return %c0_i32, %c0_i32_0 : i32, i32
  }
  func.func @transform_10(%arg0: i32) -> (i32, i32) {
    %c0_i32 = arith.constant 0 : i32
    %c0_i32_0 = arith.constant 0 : i32
    %c0_i32_1 = arith.constant 0 : i32
    return %c0_i32, %c0_i32_0 : i32, i32
  }
  func.func @transform_11(%arg0: i32) -> (i32, i32) {
    %c0_i32 = arith.constant 0 : i32
    %c0_i32_0 = arith.constant 0 : i32
    %c0_i32_1 = arith.constant 0 : i32
    return %c0_i32, %c0_i32_0 : i32, i32
  }
  func.func @transform_12(%arg0: i32) -> (i32, i32) {
    %c0_i32 = arith.constant 0 : i32
    %c0_i32_0 = arith.constant 0 : i32
    %c0_i32_1 = arith.constant 0 : i32
    return %c0_i32, %c0_i32_0 : i32, i32
  }
  func.func @transform_13(%arg0: i32) -> (i32, i32) {
    %c0_i32 = arith.constant 0 : i32
    %c0_i32_0 = arith.constant 0 : i32
    %c0_i32_1 = arith.constant 0 : i32
    return %c0_i32, %c0_i32_0 : i32, i32
  }
  func.func @transform_14(%arg0: i32) -> (i32, i32) {
    %c0_i32 = arith.constant 0 : i32
    %c0_i32_0 = arith.constant 0 : i32
    %c0_i32_1 = arith.constant 0 : i32
    return %c0_i32, %c0_i32_0 : i32, i32
  }
  func.func @transform_15(%arg0: i32) -> (i32, i32) {
    %c0_i32 = arith.constant 0 : i32
    %c0_i32_0 = arith.constant 0 : i32
    return %arg0, %c0_i32 : i32, i32
  }
}

</mosaic_0001>

<llo_original>
// kernel: tpu_custom_call.1
$region0: #{tpu_custom_call.1}
  #allocation0 [shape = 'u32[]', space=smem, size = 0x4, offset = 0x4, fixed_abs, tag = 'smem constant byte address 0x4 - core index']
  #allocation1 [shape = 'u32[144,128]{1,0:T(1,128)}', space=vmem, size = 0x12000, scoped, tag = 'internal scratch']
  #allocation2 [shape = 'f32[128,20]{1,0:T(8,128)}', space=vmem, size = 0x10000, scoped, tag = 'scratch operand']
  #allocation3 [shape = 'f32[1,1]{1,0:T(1,128)S(1)}', space=vmem, size = 0x200, scoped, tag = 'scoped memory for tpu_custom_call.1']
  %s0 = inlined_call_operand.vmem [shape: f32[256,16], index: 0, kind: input, shape index: {}]
  %s1 = inlined_call_operand.vmem [shape: f32[16,32], index: 1, kind: input, shape index: {}]
  %s2 = inlined_call_operand.vmem [shape: f32[1,32], index: 2, kind: input, shape index: {}]
  %s3 = inlined_call_operand.vmem [shape: f32[32,32], index: 3, kind: input, shape index: {}]
  %s4 = inlined_call_operand.vmem [shape: f32[1,32], index: 4, kind: input, shape index: {}]
  %s5 = inlined_call_operand.vmem [shape: f32[32,4], index: 5, kind: input, shape index: {}]
  %s6 = inlined_call_operand.vmem [shape: f32[1,4], index: 6, kind: input, shape index: {}]
  %s7 = inlined_call_operand.vmem [shape: f32[1,4], index: 7, kind: input, shape index: {}]
  %s8 = inlined_call_operand.vmem [shape: f32[1,4], index: 8, kind: input, shape index: {}]
  %s9 = inlined_call_operand.vmem [shape: f32[20,32], index: 9, kind: input, shape index: {}]
  %s10 = inlined_call_operand.vmem [shape: f32[1,32], index: 10, kind: input, shape index: {}]
  %s11 = inlined_call_operand.vmem [shape: f32[32,32], index: 11, kind: input, shape index: {}]
  %s12 = inlined_call_operand.vmem [shape: f32[1,32], index: 12, kind: input, shape index: {}]
  %s13 = inlined_call_operand.vmem [shape: f32[32,1], index: 13, kind: input, shape index: {}]
  %s14 = inlined_call_operand.<no memory space> [shape: f32[1,1], index: 14, kind: input, shape index: {}]
  %s15 = inlined_call_operand.vmem [shape: f32[256,5], index: 15, kind: output, shape index: {}]
  %s16 = sld [smem:[#allocation0]]
  $region93: #{tpu_custom_call.1} parent=0
    _
  %s18 = ssub.s32 1, %s16
  %s19 = scalar_select 0, %s18, %s16
  %v20 = vstv %s14
  %21 = vst [vmem:[#allocation3] sm:$0x1] %v20
  loop: start=0, step=1, limit=4
  $region2: #{tpu_custom_call.1} parent=0 // loop_pre_header
    _
  $region3: #{tpu_custom_call.1} parent=0 // loop_header
    %s23 = sphi 0, %s27
    %p24 = scmp.ge.s32.totalorder %s23, 4
    %s33 = sphi 0, %s35
    %s36 = sphi 0, %s33
    %s37 = sphi 0, %s36
    %s53 = sphi 0, %s37
    %s57 = sphi 0, %s57
    %s59 = sphi 0, %s57
    %s60 = sphi 0, %s59
    %s74 = sphi 0, %s60
    %s78 = sphi 0, %s78
    %s80 = sphi 0, %s78
    %s81 = sphi 0, %s80
    %s95 = sphi 0, %s81
    %s99 = sphi 0, %s99
    %s101 = sphi 0, %s99
    %s102 = sphi 0, %s101
    %s116 = sphi 0, %s102
    %s120 = sphi 0, %s120
    %s122 = sphi 0, %s120
    %s123 = sphi 0, %s122
    %s137 = sphi 0, %s123
    %s141 = sphi 0, %s141
    %s143 = sphi 0, %s141
    %s144 = sphi 0, %s143
    %s158 = sphi 0, %s144
    %s162 = sphi 0, %s162
    %s164 = sphi 0, %s162
    %s165 = sphi 0, %s164
    %s179 = sphi 0, %s165
    %s183 = sphi 0, %s183
    %s185 = sphi 0, %s183
    %s186 = sphi 0, %s185
    %s200 = sphi 0, %s186
    %s204 = sphi 0, %s204
    %s206 = sphi 0, %s204
    %s207 = sphi 0, %s206
    %s221 = sphi 0, %s207
    %s225 = sphi 0, %s225
    %s227 = sphi 0, %s225
    %s228 = sphi 0, %s227
    %s242 = sphi 0, %s228
    %s246 = sphi 0, %s246
    %s248 = sphi 0, %s246
    %s249 = sphi 0, %s248
    %s263 = sphi 0, %s249
    %s267 = sphi 0, %s267
    %s269 = sphi 0, %s267
    %s270 = sphi 0, %s269
    %s284 = sphi 0, %s270
    %s288 = sphi 0, %s288
    %s290 = sphi 0, %s288
    %s291 = sphi 0, %s290
    %s305 = sphi 0, %s291
    %s309 = sphi 0, %s309
    %s311 = sphi 0, %s309
    %s312 = sphi 0, %s311
    %s326 = sphi 0, %s312
    %s330 = sphi 0, %s330
    %s332 = sphi 0, %s330
    %s333 = sphi 0, %s332
    %s347 = sphi 0, %s333
    %s353 = sphi 0, %s355
    %s356 = sphi 0, %s353
    %s357 = sphi 0, %s356
    %s373 = sphi 0, %s357
  $region4: #{tpu_custom_call.1} parent=0 // loop_header_branch
    %26 = sbr.rel (%p24) target = $region8
  $region5: #{tpu_custom_call.1} parent=0 // loop_body
    %s28 = ssub.s32 %s23, 1
    %s29 = ssub.s32 %s23, 2
    %s30 = sadd.s32 %s23, 1
    %s31 = ssub.s32 %s23, %s30
    %p32 = scmp.eq.s32.totalorder %s31, 0
    %s34 = sadd.s32 %s33, 1
    %s35 = scalar_select %p32, %s33, %s34
    %p38 = pneg %p32
    %p39 = scmp.eq.s32.totalorder %s23, 1
    %p40 = por %p38, %p39
    %p41 = scmp.ne.s32.totalorder %s33, %s36
    %p42 = scmp.eq.s32.totalorder %s23, 0
    %p43 = por %p41, %p42
    %p44 = scmp.ne.s32.totalorder %s33, %s36
    %p45 = scmp.eq.s32.totalorder %s28, 1
    %p46 = por %p44, %p45
    %p47 = scmp.ne.s32.totalorder %s36, %s37
    %p48 = scmp.eq.s32.totalorder %s28, 0
    %p49 = por %p47, %p48
    %p50 = scmp.ne.s32.totalorder %s36, %s37
    %p51 = scmp.eq.s32.totalorder %s29, 1
    %p52 = por %p50, %p51
    %p54 = scmp.ne.s32.totalorder %s37, %s53
    %p55 = scmp.eq.s32.totalorder %s29, 0
    %p56 = por %p54, %p55
    %s58 = sadd.s32 %s57, 1
    %p61 = scmp.eq.s32.totalorder %s23, 1
    %p62 = scmp.ne.s32.totalorder %s57, %s59
    %p63 = scmp.eq.s32.totalorder %s23, 0
    %p64 = por %p62, %p63
    %p65 = scmp.ne.s32.totalorder %s57, %s59
    %p66 = scmp.eq.s32.totalorder %s28, 1
    %p67 = por %p65, %p66
    %p68 = scmp.ne.s32.totalorder %s59, %s60
    %p69 = scmp.eq.s32.totalorder %s28, 0
    %p70 = por %p68, %p69
    %p71 = scmp.ne.s32.totalorder %s59, %s60
    %p72 = scmp.eq.s32.totalorder %s29, 1
    %p73 = por %p71, %p72
    %p75 = scmp.ne.s32.totalorder %s60, %s74
    %p76 = scmp.eq.s32.totalorder %s29, 0
    %p77 = por %p75, %p76
    %s79 = sadd.s32 %s78, 1
    %p82 = scmp.eq.s32.totalorder %s23, 1
    %p83 = scmp.ne.s32.totalorder %s78, %s80
    %p84 = scmp.eq.s32.totalorder %s23, 0
    %p85 = por %p83, %p84
    %p86 = scmp.ne.s32.totalorder %s78, %s80
    %p87 = scmp.eq.s32.totalorder %s28, 1
    %p88 = por %p86, %p87
    %p89 = scmp.ne.s32.totalorder %s80, %s81
    %p90 = scmp.eq.s32.totalorder %s28, 0
    %p91 = por %p89, %p90
    %p92 = scmp.ne.s32.totalorder %s80, %s81
    %p93 = scmp.eq.s32.totalorder %s29, 1
    %p94 = por %p92, %p93
    %p96 = scmp.ne.s32.totalorder %s81, %s95
    %p97 = scmp.eq.s32.totalorder %s29, 0
    %p98 = por %p96, %p97
    %s100 = sadd.s32 %s99, 1
    %p103 = scmp.eq.s32.totalorder %s23, 1
    %p104 = scmp.ne.s32.totalorder %s99, %s101
    %p105 = scmp.eq.s32.totalorder %s23, 0
    %p106 = por %p104, %p105
    %p107 = scmp.ne.s32.totalorder %s99, %s101
    %p108 = scmp.eq.s32.totalorder %s28, 1
    %p109 = por %p107, %p108
    %p110 = scmp.ne.s32.totalorder %s101, %s102
    %p111 = scmp.eq.s32.totalorder %s28, 0
    %p112 = por %p110, %p111
    %p113 = scmp.ne.s32.totalorder %s101, %s102
    %p114 = scmp.eq.s32.totalorder %s29, 1
    %p115 = por %p113, %p114
    %p117 = scmp.ne.s32.totalorder %s102, %s116
    %p118 = scmp.eq.s32.totalorder %s29, 0
    %p119 = por %p117, %p118
    %s121 = sadd.s32 %s120, 1
    %p124 = scmp.eq.s32.totalorder %s23, 1
    %p125 = scmp.ne.s32.totalorder %s120, %s122
    %p126 = scmp.eq.s32.totalorder %s23, 0
    %p127 = por %p125, %p126
    %p128 = scmp.ne.s32.totalorder %s120, %s122
    %p129 = scmp.eq.s32.totalorder %s28, 1
    %p130 = por %p128, %p129
    %p131 = scmp.ne.s32.totalorder %s122, %s123
    %p132 = scmp.eq.s32.totalorder %s28, 0
    %p133 = por %p131, %p132
    %p134 = scmp.ne.s32.totalorder %s122, %s123
    %p135 = scmp.eq.s32.totalorder %s29, 1
    %p136 = por %p134, %p135
    %p138 = scmp.ne.s32.totalorder %s123, %s137
    %p139 = scmp.eq.s32.totalorder %s29, 0
    %p140 = por %p138, %p139
    %s142 = sadd.s32 %s141, 1
    %p145 = scmp.eq.s32.totalorder %s23, 1
    %p146 = scmp.ne.s32.totalorder %s141, %s143
    %p147 = scmp.eq.s32.totalorder %s23, 0
    %p148 = por %p146, %p147
    %p149 = scmp.ne.s32.totalorder %s141, %s143
    %p150 = scmp.eq.s32.totalorder %s28, 1
    %p151 = por %p149, %p150
    %p152 = scmp.ne.s32.totalorder %s143, %s144
    %p153 = scmp.eq.s32.totalorder %s28, 0
    %p154 = por %p152, %p153
    %p155 = scmp.ne.s32.totalorder %s143, %s144
    %p156 = scmp.eq.s32.totalorder %s29, 1
    %p157 = por %p155, %p156
    %p159 = scmp.ne.s32.totalorder %s144, %s158
    %p160 = scmp.eq.s32.totalorder %s29, 0
    %p161 = por %p159, %p160
    %s163 = sadd.s32 %s162, 1
    %p166 = scmp.eq.s32.totalorder %s23, 1
    %p167 = scmp.ne.s32.totalorder %s162, %s164
    %p168 = scmp.eq.s32.totalorder %s23, 0
    %p169 = por %p167, %p168
    %p170 = scmp.ne.s32.totalorder %s162, %s164
    %p171 = scmp.eq.s32.totalorder %s28, 1
    %p172 = por %p170, %p171
    %p173 = scmp.ne.s32.totalorder %s164, %s165
    %p174 = scmp.eq.s32.totalorder %s28, 0
    %p175 = por %p173, %p174
    %p176 = scmp.ne.s32.totalorder %s164, %s165
    %p177 = scmp.eq.s32.totalorder %s29, 1
    %p178 = por %p176, %p177
    %p180 = scmp.ne.s32.totalorder %s165, %s179
    %p181 = scmp.eq.s32.totalorder %s29, 0
    %p182 = por %p180, %p181
    %s184 = sadd.s32 %s183, 1
    %p187 = scmp.eq.s32.totalorder %s23, 1
    %p188 = scmp.ne.s32.totalorder %s183, %s185
    %p189 = scmp.eq.s32.totalorder %s23, 0
    %p190 = por %p188, %p189
    %p191 = scmp.ne.s32.totalorder %s183, %s185
    %p192 = scmp.eq.s32.totalorder %s28, 1
    %p193 = por %p191, %p192
    %p194 = scmp.ne.s32.totalorder %s185, %s186
    %p195 = scmp.eq.s32.totalorder %s28, 0
    %p196 = por %p194, %p195
    %p197 = scmp.ne.s32.totalorder %s185, %s186
    %p198 = scmp.eq.s32.totalorder %s29, 1
    %p199 = por %p197, %p198
    %p201 = scmp.ne.s32.totalorder %s186, %s200
    %p202 = scmp.eq.s32.totalorder %s29, 0
    %p203 = por %p201, %p202
    %s205 = sadd.s32 %s204, 1
    %p208 = scmp.eq.s32.totalorder %s23, 1
    %p209 = scmp.ne.s32.totalorder %s204, %s206
    %p210 = scmp.eq.s32.totalorder %s23, 0
    %p211 = por %p209, %p210
    %p212 = scmp.ne.s32.totalorder %s204, %s206
    %p213 = scmp.eq.s32.totalorder %s28, 1
    %p214 = por %p212, %p213
    %p215 = scmp.ne.s32.totalorder %s206, %s207
    %p216 = scmp.eq.s32.totalorder %s28, 0
    %p217 = por %p215, %p216
    %p218 = scmp.ne.s32.totalorder %s206, %s207
    %p219 = scmp.eq.s32.totalorder %s29, 1
    %p220 = por %p218, %p219
    %p222 = scmp.ne.s32.totalorder %s207, %s221
    %p223 = scmp.eq.s32.totalorder %s29, 0
    %p224 = por %p222, %p223
    %s226 = sadd.s32 %s225, 1
    %p229 = scmp.eq.s32.totalorder %s23, 1
    %p230 = scmp.ne.s32.totalorder %s225, %s227
    %p231 = scmp.eq.s32.totalorder %s23, 0
    %p232 = por %p230, %p231
    %p233 = scmp.ne.s32.totalorder %s225, %s227
    %p234 = scmp.eq.s32.totalorder %s28, 1
    %p235 = por %p233, %p234
    %p236 = scmp.ne.s32.totalorder %s227, %s228
    %p237 = scmp.eq.s32.totalorder %s28, 0
    %p238 = por %p236, %p237
    %p239 = scmp.ne.s32.totalorder %s227, %s228
    %p240 = scmp.eq.s32.totalorder %s29, 1
    %p241 = por %p239, %p240
    %p243 = scmp.ne.s32.totalorder %s228, %s242
    %p244 = scmp.eq.s32.totalorder %s29, 0
    %p245 = por %p243, %p244
    %s247 = sadd.s32 %s246, 1
    %p250 = scmp.eq.s32.totalorder %s23, 1
    %p251 = scmp.ne.s32.totalorder %s246, %s248
    %p252 = scmp.eq.s32.totalorder %s23, 0
    %p253 = por %p251, %p252
    %p254 = scmp.ne.s32.totalorder %s246, %s248
    %p255 = scmp.eq.s32.totalorder %s28, 1
    %p256 = por %p254, %p255
    %p257 = scmp.ne.s32.totalorder %s248, %s249
    %p258 = scmp.eq.s32.totalorder %s28, 0
    %p259 = por %p257, %p258
    %p260 = scmp.ne.s32.totalorder %s248, %s249
    %p261 = scmp.eq.s32.totalorder %s29, 1
    %p262 = por %p260, %p261
    %p264 = scmp.ne.s32.totalorder %s249, %s263
    %p265 = scmp.eq.s32.totalorder %s29, 0
    %p266 = por %p264, %p265
    %s268 = sadd.s32 %s267, 1
    %p271 = scmp.eq.s32.totalorder %s23, 1
    %p272 = scmp.ne.s32.totalorder %s267, %s269
    %p273 = scmp.eq.s32.totalorder %s23, 0
    %p274 = por %p272, %p273
    %p275 = scmp.ne.s32.totalorder %s267, %s269
    %p276 = scmp.eq.s32.totalorder %s28, 1
    %p277 = por %p275, %p276
    %p278 = scmp.ne.s32.totalorder %s269, %s270
    %p279 = scmp.eq.s32.totalorder %s28, 0
    %p280 = por %p278, %p279
    %p281 = scmp.ne.s32.totalorder %s269, %s270
    %p282 = scmp.eq.s32.totalorder %s29, 1
    %p283 = por %p281, %p282
    %p285 = scmp.ne.s32.totalorder %s270, %s284
    %p286 = scmp.eq.s32.totalorder %s29, 0
    %p287 = por %p285, %p286
    %s289 = sadd.s32 %s288, 1
    %p292 = scmp.eq.s32.totalorder %s23, 1
    %p293 = scmp.ne.s32.totalorder %s288, %s290
    %p294 = scmp.eq.s32.totalorder %s23, 0
    %p295 = por %p293, %p294
    %p296 = scmp.ne.s32.totalorder %s288, %s290
    %p297 = scmp.eq.s32.totalorder %s28, 1
    %p298 = por %p296, %p297
    %p299 = scmp.ne.s32.totalorder %s290, %s291
    %p300 = scmp.eq.s32.totalorder %s28, 0
    %p301 = por %p299, %p300
    %p302 = scmp.ne.s32.totalorder %s290, %s291
    %p303 = scmp.eq.s32.totalorder %s29, 1
    %p304 = por %p302, %p303
    %p306 = scmp.ne.s32.totalorder %s291, %s305
    %p307 = scmp.eq.s32.totalorder %s29, 0
    %p308 = por %p306, %p307
    %s310 = sadd.s32 %s309, 1
    %p313 = scmp.eq.s32.totalorder %s23, 1
    %p314 = scmp.ne.s32.totalorder %s309, %s311
    %p315 = scmp.eq.s32.totalorder %s23, 0
    %p316 = por %p314, %p315
    %p317 = scmp.ne.s32.totalorder %s309, %s311
    %p318 = scmp.eq.s32.totalorder %s28, 1
    %p319 = por %p317, %p318
    %p320 = scmp.ne.s32.totalorder %s311, %s312
    %p321 = scmp.eq.s32.totalorder %s28, 0
    %p322 = por %p320, %p321
    %p323 = scmp.ne.s32.totalorder %s311, %s312
    %p324 = scmp.eq.s32.totalorder %s29, 1
    %p325 = por %p323, %p324
    %p327 = scmp.ne.s32.totalorder %s312, %s326
    %p328 = scmp.eq.s32.totalorder %s29, 0
    %p329 = por %p327, %p328
    %s331 = sadd.s32 %s330, 1
    %p334 = scmp.eq.s32.totalorder %s23, 1
    %p335 = scmp.ne.s32.totalorder %s330, %s332
    %p336 = scmp.eq.s32.totalorder %s23, 0
    %p337 = por %p335, %p336
    %p338 = scmp.ne.s32.totalorder %s330, %s332
    %p339 = scmp.eq.s32.totalorder %s28, 1
    %p340 = por %p338, %p339
    %p341 = scmp.ne.s32.totalorder %s332, %s333
    %p342 = scmp.eq.s32.totalorder %s28, 0
    %p343 = por %p341, %p342
    %p344 = scmp.ne.s32.totalorder %s332, %s333
    %p345 = scmp.eq.s32.totalorder %s29, 1
    %p346 = por %p344, %p345
    %p348 = scmp.ne.s32.totalorder %s333, %s347
    %p349 = scmp.eq.s32.totalorder %s29, 0
    %p350 = por %p348, %p349
    %s351 = ssub.s32 %s23, %s30
    %p352 = scmp.eq.s32.totalorder %s351, 0
    %s354 = sadd.s32 %s353, 1
    %s355 = scalar_select %p352, %s353, %s354
    %p358 = pneg %p352
    %p359 = scmp.eq.s32.totalorder %s23, 1
    %p360 = por %p358, %p359
    %p361 = scmp.ne.s32.totalorder %s353, %s356
    %p362 = scmp.eq.s32.totalorder %s23, 0
    %p363 = por %p361, %p362
    %p364 = scmp.ne.s32.totalorder %s353, %s356
    %p365 = scmp.eq.s32.totalorder %s28, 1
    %p366 = por %p364, %p365
    %p367 = scmp.ne.s32.totalorder %s356, %s357
    %p368 = scmp.eq.s32.totalorder %s28, 0
    %p369 = por %p367, %p368
    %p370 = scmp.ne.s32.totalorder %s356, %s357
    %p371 = scmp.eq.s32.totalorder %s29, 1
    %p372 = por %p370, %p371
    %p374 = scmp.ne.s32.totalorder %s357, %s373
    %p375 = scmp.eq.s32.totalorder %s29, 0
    %p376 = por %p374, %p375
    %p377 = scmp.le.s32.totalorder 1, %s23
    %p378 = scmp.lt.s32.totalorder %s23, 3
    %p379 = pnand %p377, %p378
    %p380 = pneg %p379
    // Predicated region
    $region9: #{tpu_custom_call.1} parent=5 // pred_check
      _
    $region10: #{tpu_custom_call.1} parent=5 // pred_check_branch
      %382 = sbr.rel (%p379) target = $region12
    $region11: #{tpu_custom_call.1} parent=5 // pred_region
      %s383 = ssub.s32 %s23, 1
      // Predicated region
      $region13: #{tpu_custom_call.1} parent=11 // pred_check
        %p384 = pneg %p70
      $region14: #{tpu_custom_call.1} parent=11 // pred_check_branch
        %386 = sbr.rel (%p384) target = $region16
      $region15: #{tpu_custom_call.1} parent=11 // pred_region
        _
      $region16: #{tpu_custom_call.1} parent=11 // pred_fallthru
        _
      // Predicated region
      $region17: #{tpu_custom_call.1} parent=11 // pred_check
        %p387 = pneg %p91
      $region18: #{tpu_custom_call.1} parent=11 // pred_check_branch
        %389 = sbr.rel (%p387) target = $region20
      $region19: #{tpu_custom_call.1} parent=11 // pred_region
        _
      $region20: #{tpu_custom_call.1} parent=11 // pred_fallthru
        _
      // Predicated region
      $region21: #{tpu_custom_call.1} parent=11 // pred_check
        %p390 = pneg %p112
      $region22: #{tpu_custom_call.1} parent=11 // pred_check_branch
        %392 = sbr.rel (%p390) target = $region24
      $region23: #{tpu_custom_call.1} parent=11 // pred_region
        _
      $region24: #{tpu_custom_call.1} parent=11 // pred_fallthru
        _
      // Predicated region
      $region25: #{tpu_custom_call.1} parent=11 // pred_check
        %p393 = pneg %p133
      $region26: #{tpu_custom_call.1} parent=11 // pred_check_branch
        %395 = sbr.rel (%p393) target = $region28
      $region27: #{tpu_custom_call.1} parent=11 // pred_region
        _
      $region28: #{tpu_custom_call.1} parent=11 // pred_fallthru
        _
      // Predicated region
      $region29: #{tpu_custom_call.1} parent=11 // pred_check
        %p396 = pneg %p154
      $region30: #{tpu_custom_call.1} parent=11 // pred_check_branch
        %398 = sbr.rel (%p396) target = $region32
      $region31: #{tpu_custom_call.1} parent=11 // pred_region
        _
      $region32: #{tpu_custom_call.1} parent=11 // pred_fallthru
        _
      // Predicated region
      $region33: #{tpu_custom_call.1} parent=11 // pred_check
        %p399 = pneg %p175
      $region34: #{tpu_custom_call.1} parent=11 // pred_check_branch
        %401 = sbr.rel (%p399) target = $region36
      $region35: #{tpu_custom_call.1} parent=11 // pred_region
        _
      $region36: #{tpu_custom_call.1} parent=11 // pred_fallthru
        _
      // Predicated region
      $region37: #{tpu_custom_call.1} parent=11 // pred_check
        %p402 = pneg %p196
      $region38: #{tpu_custom_call.1} parent=11 // pred_check_branch
        %404 = sbr.rel (%p402) target = $region40
      $region39: #{tpu_custom_call.1} parent=11 // pred_region
        _
      $region40: #{tpu_custom_call.1} parent=11 // pred_fallthru
        _
      // Predicated region
      $region41: #{tpu_custom_call.1} parent=11 // pred_check
        %p405 = pneg %p217
      $region42: #{tpu_custom_call.1} parent=11 // pred_check_branch
        %407 = sbr.rel (%p405) target = $region44
      $region43: #{tpu_custom_call.1} parent=11 // pred_region
        _
      $region44: #{tpu_custom_call.1} parent=11 // pred_fallthru
        _
      // Predicated region
      $region45: #{tpu_custom_call.1} parent=11 // pred_check
        %p408 = pneg %p238
      $region46: #{tpu_custom_call.1} parent=11 // pred_check_branch
        %410 = sbr.rel (%p408) target = $region48
      $region47: #{tpu_custom_call.1} parent=11 // pred_region
        _
      $region48: #{tpu_custom_call.1} parent=11 // pred_fallthru
        _
      // Predicated region
      $region49: #{tpu_custom_call.1} parent=11 // pred_check
        %p411 = pneg %p259
      $region50: #{tpu_custom_call.1} parent=11 // pred_check_branch
        %413 = sbr.rel (%p411) target = $region52
      $region51: #{tpu_custom_call.1} parent=11 // pred_region
        _
      $region52: #{tpu_custom_call.1} parent=11 // pred_fallthru
        _
      // Predicated region
      $region53: #{tpu_custom_call.1} parent=11 // pred_check
        %p414 = pneg %p280
      $region54: #{tpu_custom_call.1} parent=11 // pred_check_branch
        %416 = sbr.rel (%p414) target = $region56
      $region55: #{tpu_custom_call.1} parent=11 // pred_region
        _
      $region56: #{tpu_custom_call.1} parent=11 // pred_fallthru
        _
      // Predicated region
      $region57: #{tpu_custom_call.1} parent=11 // pred_check
        %p417 = pneg %p301
      $region58: #{tpu_custom_call.1} parent=11 // pred_check_branch
        %419 = sbr.rel (%p417) target = $region60
      $region59: #{tpu_custom_call.1} parent=11 // pred_region
        _
      $region60: #{tpu_custom_call.1} parent=11 // pred_fallthru
        _
      // Predicated region
      $region61: #{tpu_custom_call.1} parent=11 // pred_check
        %p420 = pneg %p322
      $region62: #{tpu_custom_call.1} parent=11 // pred_check_branch
        %422 = sbr.rel (%p420) target = $region64
      $region63: #{tpu_custom_call.1} parent=11 // pred_region
        _
      $region64: #{tpu_custom_call.1} parent=11 // pred_fallthru
        _
      // Predicated region
      $region65: #{tpu_custom_call.1} parent=11 // pred_check
        %p423 = pneg %p343
      $region66: #{tpu_custom_call.1} parent=11 // pred_check_branch
        %425 = sbr.rel (%p423) target = $region68
      $region67: #{tpu_custom_call.1} parent=11 // pred_region
        _
      $region68: #{tpu_custom_call.1} parent=11 // pred_fallthru
        _
    $region12: #{tpu_custom_call.1} parent=5 // pred_fallthru
      _
    %p426 = scmp.lt.s32.totalorder %s23, 2
    // Predicated region
    $region69: #{tpu_custom_call.1} parent=5 // pred_check
      %p427 = pneg %p426
    $region70: #{tpu_custom_call.1} parent=5 // pred_check_branch
      %429 = sbr.rel (%p427) target = $region72
    $region71: #{tpu_custom_call.1} parent=5 // pred_region
      // Predicated region
      $region73: #{tpu_custom_call.1} parent=71 // pred_check
        %p430 = pneg %p43
      $region74: #{tpu_custom_call.1} parent=71 // pred_check_branch
        %432 = sbr.rel (%p430) target = $region76
      $region75: #{tpu_custom_call.1} parent=71 // pred_region
        %s433 = smul.u32 16, %s23
        %p434 = scmp.lt.s32.totalorder %s433, 31
        %s435 = scalar_select %p434, %s433, 31
        %s436 = smul.addr %s435, 8
        %s437 = scalar_lea.vmem %s0, %s436
        %s438 = smul.u32 16, %s23
      $region76: #{tpu_custom_call.1} parent=71 // pred_fallthru
        _
    $region72: #{tpu_custom_call.1} parent=5 // pred_fallthru
      _
    %p439 = scmp.le.s32.totalorder 1, %s23
    %p440 = scmp.lt.s32.totalorder %s23, 3
    %p441 = pnand %p439, %p440
    %p442 = pneg %p441
    // Predicated region
    $region77: #{tpu_custom_call.1} parent=5 // pred_check
      _
    $region78: #{tpu_custom_call.1} parent=5 // pred_check_branch
      %444 = sbr.rel (%p441) target = $region80
    $region79: #{tpu_custom_call.1} parent=5 // pred_region
      %s445 = ssub.s32 %s23, 1
      %s446 = smul.u32 16, %s28
      %p447 = scmp.lt.s32.totalorder %s446, 31
      %s448 = scalar_select %p447, %s446, 31
      %s449 = smul.addr %s448, 8
      %s450 = scalar_lea.vmem %s0, %s449
      %p451 = pneg %p49
      %p452 = pneg %p46
      %p453 = pneg %p70
      %p454 = pneg %p67
      %p455 = pneg %p91
      %p456 = pneg %p88
      %p457 = pneg %p112
      %p458 = pneg %p109
      %p459 = pneg %p133
      %p460 = pneg %p130
      %p461 = pneg %p154
      %p462 = pneg %p151
      %p463 = pneg %p175
      %p464 = pneg %p172
      %p465 = pneg %p196
      %p466 = pneg %p193
      %p467 = pneg %p217
      %p468 = pneg %p214
      %p469 = pneg %p238
      %p470 = pneg %p235
      %p471 = pneg %p259
      %p472 = pneg %p256
      %p473 = pneg %p280
      %p474 = pneg %p277
      %p475 = pneg %p301
      %p476 = pneg %p298
      %p477 = pneg %p322
      %p478 = pneg %p319
      %p479 = pneg %p343
      %p480 = pneg %p340
      %p481 = pneg %p369
      %p482 = pneg %p366
      %s483 = smul.u32 16, %s28
      %p484 = scmp.lt.s32.totalorder %s483, 31
      %s485 = scalar_select %p484, %s483, 31
      %s486 = smul.addr %s485, 8
      %s487 = scalar_lea.vmem %s15, %s486
      %s488 = smul.u32 16, %s28
      %p489 = scmp.lt.s32.totalorder %s488, 31
      %s490 = scalar_select %p489, %s488, 31
      %s491 = smul.addr %s490, 8
      %s492 = scalar_lea.vmem %s0, %s491
      %s493 = smul.u32 16, %s28
      %s494 = smul.u32 16, %s28
      %p495 = scmp.lt.s32.totalorder %s494, 31
      %s496 = scalar_select %p495, %s494, 31
      %s497 = smul.addr %s496, 8
      %s498 = scalar_lea.vmem %s15, %s497
      %s499 = smul.u32 16, %s28
      %v500 = vld [vmem:[%s492] sm:$0xff]
      %v501 = vld [vmem:[%s492 + $0x8] sm:$0xff]
      %v502 = vld [vmem:[%s492 + $0x10] sm:$0xff]
      %v503 = vld [vmem:[%s492 + $0x18] sm:$0xff]
      %v504 = vld [vmem:[%s492 + $0x20] sm:$0xff]
      %v505 = vld [vmem:[%s492 + $0x28] sm:$0xff]
      %v506 = vld [vmem:[%s492 + $0x30] sm:$0xff]
      %v507 = vld [vmem:[%s492 + $0x38] sm:$0xff]
      %v508 = vld [vmem:[%s492 + $0x40] sm:$0xff]
      %v509 = vld [vmem:[%s492 + $0x48] sm:$0xff]
      %v510 = vld [vmem:[%s492 + $0x50] sm:$0xff]
      %v511 = vld [vmem:[%s492 + $0x58] sm:$0xff]
      %v512 = vld [vmem:[%s492 + $0x60] sm:$0xff]
      %v513 = vld [vmem:[%s492 + $0x68] sm:$0xff]
      %v514 = vld [vmem:[%s492 + $0x70] sm:$0xff]
      %v515 = vld [vmem:[%s492 + $0x78] sm:$0xff]
      %v516 = vld [vmem:[%s1] sm:$0xff]
      %v517 = vld [vmem:[%s1 + $0x8] sm:$0xff]
      %v518 = vld [vmem:[%s2] sm:$0x1]
      %v520 = vlaneseq
      %v521 = vshrl.u32 %v520, 7
      %v522 = vsub.s32 0, %v521
      %v523 = vrot.slane %v518, %v522
      %vm525 = vcmask 130048
      %v527 = vsel %vm525, %v500, 0
      %v530 = vsel %vm525, %v501, 0
      %v533 = vsel %vm525, %v502, 0
      %v536 = vsel %vm525, %v503, 0
      %v539 = vsel %vm525, %v504, 0
      %v542 = vsel %vm525, %v505, 0
      %v545 = vsel %vm525, %v506, 0
      %v548 = vsel %vm525, %v507, 0
      %v551 = vsel %vm525, %v508, 0
      %v554 = vsel %vm525, %v509, 0
      %v557 = vsel %vm525, %v510, 0
      %v560 = vsel %vm525, %v511, 0
      %v563 = vsel %vm525, %v512, 0
      %v566 = vsel %vm525, %v513, 0
      %v569 = vsel %vm525, %v514, 0
      %v572 = vsel %vm525, %v515, 0
      %574 = vmatprep.subr.mxu0 0.0
      %575 = vmatpush1.msra.mxu0 %v516
      %576 = vmatprep.subr.mxu0 0.0
      %577 = vmatpush1.msra.mxu0 %v517
      %578 = vmatprep.subr.mxu0 0.0
      %579 = vmatpush1.msra.mxu0 0.0
      %580 = vmatprep.subr.mxu0 0.0
      %581 = vmatpush1.msra.mxu0 0.0
      %582 = vmatprep.subr.mxu0 0.0
      %583 = vmatpush1.msra.mxu0 0.0
      %584 = vmatprep.subr.mxu0 0.0
      %585 = vmatpush1.msra.mxu0 0.0
      %586 = vmatprep.subr.mxu0 0.0
      %587 = vmatpush1.msra.mxu0 0.0
      %588 = vmatprep.subr.mxu0 0.0
      %589 = vmatpush1.msra.mxu0 0.0
      %590 = vmatprep.subr.mxu0 0.0
      %591 = vmatpush1.msra.mxu0 0.0
      %592 = vmatprep.subr.mxu0 0.0
      %593 = vmatpush1.msra.mxu0 0.0
      %594 = vmatprep.subr.mxu0 0.0
      %595 = vmatpush1.msra.mxu0 0.0
      %596 = vmatprep.subr.mxu0 0.0
      %597 = vmatpush1.msra.mxu0 0.0
      %598 = vmatprep.subr.mxu0 0.0
      %599 = vmatpush1.msra.mxu0 0.0
      %600 = vmatprep.subr.mxu0 0.0
      %601 = vmatpush1.msra.mxu0 0.0
      %602 = vmatprep.subr.mxu0 0.0
      %603 = vmatpush1.msra.mxu0 0.0
      %604 = vmatprep.subr.mxu0 0.0
      %605 = vmatpush1.msra.mxu0 0.0
      %606 = vmatprep.subr.mxu0 0.0
      %607 = vmatpush1.msra.mxu0 0.0
      %608 = vmatprep.subr.mxu0 0.0
      %609 = vmatpush1.msra.mxu0 0.0
      %610 = vmatprep.subr.mxu0 0.0
      %611 = vmatpush1.msra.mxu0 0.0
      %612 = vmatprep.subr.mxu0 0.0
      %613 = vmatpush1.msra.mxu0 0.0
      %614 = vmatprep.subr.mxu0 0.0
      %615 = vmatpush1.msra.mxu0 0.0
      %616 = vmatprep.subr.mxu0 0.0
      %617 = vmatpush1.msra.mxu0 0.0
      %618 = vmatprep.subr.mxu0 0.0
      %619 = vmatpush1.msra.mxu0 0.0
      %620 = vmatprep.subr.mxu0 0.0
      %621 = vmatpush1.msra.mxu0 0.0
      %622 = vmatprep.subr.mxu0 0.0
      %623 = vmatpush1.msra.mxu0 0.0
      %624 = vmatprep.subr.mxu0 0.0
      %625 = vmatpush1.msra.mxu0 0.0
      %626 = vmatprep.subr.mxu0 0.0
      %627 = vmatpush1.msra.mxu0 0.0
      %628 = vmatprep.subr.mxu0 0.0
      %629 = vmatpush1.msra.mxu0 0.0
      %630 = vmatprep.subr.mxu0 0.0
      %631 = vmatpush1.msra.mxu0 0.0
      %632 = vmatprep.subr.mxu0 0.0
      %633 = vmatpush1.msra.mxu0 0.0
      %634 = vmatprep.subr.mxu0 0.0
      %635 = vmatpush1.msra.mxu0 0.0
      %636 = vmatprep.subr.mxu0 0.0
      %637 = vmatpush1.msra.mxu0 0.0
      %638 = vmatprep.mubr.f32.mxu0 0.0
      %639 = vmatmul.mubr.f32.gmra.mrb[0].mxu0 %v527
      %v640 = vpop.f32.mrb[0].mxu0
      %v641 = vadd.f32 %v523, %v640
      %v642 = vpop.f32.mrb[0].mxu0
      %643 = vmatprep.mubr.f32.mxu0 0.0
      %644 = vmatmul.mubr.f32.gmra.mrb[0].mxu0 %v530
      %v645 = vpop.f32.mrb[0].mxu0
      %v646 = vadd.f32 %v523, %v645
      %v647 = vpop.f32.mrb[0].mxu0
      %648 = vmatprep.mubr.f32.mxu0 0.0
      %649 = vmatmul.mubr.f32.gmra.mrb[0].mxu0 %v533
      %v650 = vpop.f32.mrb[0].mxu0
      %v651 = vadd.f32 %v523, %v650
      %v652 = vpop.f32.mrb[0].mxu0
      %653 = vmatprep.mubr.f32.mxu0 0.0
      %654 = vmatmul.mubr.f32.gmra.mrb[0].mxu0 %v536
      %v655 = vpop.f32.mrb[0].mxu0
      %v656 = vadd.f32 %v523, %v655
      %v657 = vpop.f32.mrb[0].mxu0
      %658 = vmatprep.mubr.f32.mxu0 0.0
      %659 = vmatmul.mubr.f32.gmra.mrb[0].mxu0 %v539
      %v660 = vpop.f32.mrb[0].mxu0
      %v661 = vadd.f32 %v523, %v660
      %v662 = vpop.f32.mrb[0].mxu0
      %663 = vmatprep.mubr.f32.mxu0 0.0
      %664 = vmatmul.mubr.f32.gmra.mrb[0].mxu0 %v542
      %v665 = vpop.f32.mrb[0].mxu0
      %v666 = vadd.f32 %v523, %v665
      %v667 = vpop.f32.mrb[0].mxu0
      %668 = vmatprep.mubr.f32.mxu0 0.0
      %669 = vmatmul.mubr.f32.gmra.mrb[0].mxu0 %v545
      %v670 = vpop.f32.mrb[0].mxu0
      %v671 = vadd.f32 %v523, %v670
      %v672 = vpop.f32.mrb[0].mxu0
      %673 = vmatprep.mubr.f32.mxu0 0.0
      %674 = vmatmul.mubr.f32.gmra.mrb[0].mxu0 %v548
      %v675 = vpop.f32.mrb[0].mxu0
      %v676 = vadd.f32 %v523, %v675
      %v677 = vpop.f32.mrb[0].mxu0
      %678 = vmatprep.mubr.f32.mxu0 0.0
      %679 = vmatmul.mubr.f32.gmra.mrb[0].mxu0 %v551
      %v680 = vpop.f32.mrb[0].mxu0
      %v681 = vadd.f32 %v523, %v680
      %v682 = vpop.f32.mrb[0].mxu0
      %683 = vmatprep.mubr.f32.mxu0 0.0
      %684 = vmatmul.mubr.f32.gmra.mrb[0].mxu0 %v554
      %v685 = vpop.f32.mrb[0].mxu0
      %v686 = vadd.f32 %v523, %v685
      %v687 = vpop.f32.mrb[0].mxu0
      %688 = vmatprep.mubr.f32.mxu0 0.0
      %689 = vmatmul.mubr.f32.gmra.mrb[0].mxu0 %v557
      %v690 = vpop.f32.mrb[0].mxu0
      %v691 = vadd.f32 %v523, %v690
      %v692 = vpop.f32.mrb[0].mxu0
      %693 = vmatprep.mubr.f32.mxu0 0.0
      %694 = vmatmul.mubr.f32.gmra.mrb[0].mxu0 %v560
      %v695 = vpop.f32.mrb[0].mxu0
      %v696 = vadd.f32 %v523, %v695
      %v697 = vpop.f32.mrb[0].mxu0
      %698 = vmatprep.mubr.f32.mxu0 0.0
      %699 = vmatmul.mubr.f32.gmra.mrb[0].mxu0 %v563
      %v700 = vpop.f32.mrb[0].mxu0
      %v701 = vadd.f32 %v523, %v700
      %v702 = vpop.f32.mrb[0].mxu0
      %703 = vmatprep.mubr.f32.mxu0 0.0
      %704 = vmatmul.mubr.f32.gmra.mrb[0].mxu0 %v566
      %v705 = vpop.f32.mrb[0].mxu0
      %v706 = vadd.f32 %v523, %v705
      %v707 = vpop.f32.mrb[0].mxu0
      %708 = vmatprep.mubr.f32.mxu0 0.0
      %709 = vmatmul.mubr.f32.gmra.mrb[0].mxu0 %v569
      %v710 = vpop.f32.mrb[0].mxu0
      %v711 = vadd.f32 %v523, %v710
      %v712 = vpop.f32.mrb[0].mxu0
      %713 = vmatprep.mubr.f32.mxu0 0.0
      %714 = vmatmul.mubr.f32.gmra.mrb[0].mxu0 %v572
      %v715 = vpop.f32.mrb[0].mxu0
      %v716 = vadd.f32 %v523, %v715
      %v717 = vpop.f32.mrb[0].mxu0
      %718 = vdwg.mxu0
      %v719 = vmax.f32 %v641, 0.0
      %v720 = vmax.f32 %v646, 0.0
      %v721 = vmax.f32 %v651, 0.0
      %v722 = vmax.f32 %v656, 0.0
      %v723 = vmax.f32 %v661, 0.0
      %v724 = vmax.f32 %v666, 0.0
      %v725 = vmax.f32 %v671, 0.0
      %v726 = vmax.f32 %v676, 0.0
      %v727 = vmax.f32 %v681, 0.0
      %v728 = vmax.f32 %v686, 0.0
      %v729 = vmax.f32 %v691, 0.0
      %v730 = vmax.f32 %v696, 0.0
      %v731 = vmax.f32 %v701, 0.0
      %v732 = vmax.f32 %v706, 0.0
      %v733 = vmax.f32 %v711, 0.0
      %v734 = vmax.f32 %v716, 0.0
      %v735 = vld [vmem:[%s3] sm:$0xff]
      %v736 = vld [vmem:[%s3 + $0x8] sm:$0xff]
      %v737 = vld [vmem:[%s3 + $0x10] sm:$0xff]
      %v738 = vld [vmem:[%s3 + $0x18] sm:$0xff]
      %v739 = vld [vmem:[%s4] sm:$0x1]
      %v741 = vlaneseq
      %v742 = vshrl.u32 %v741, 7
      %v743 = vsub.s32 0, %v742
      %v744 = vrot.slane %v739, %v743
      %vm746 = vcmask 261120
      %v748 = vsel %vm746, %v719, 0
      %v751 = vsel %vm746, %v720, 0
      %v754 = vsel %vm746, %v721, 0
      %v757 = vsel %vm746, %v722, 0
      %v760 = vsel %vm746, %v723, 0
      %v763 = vsel %vm746, %v724, 0
      %v766 = vsel %vm746, %v725, 0
      %v769 = vsel %vm746, %v726, 0
      %v772 = vsel %vm746, %v727, 0
      %v775 = vsel %vm746, %v728, 0
      %v778 = vsel %vm746, %v729, 0
      %v781 = vsel %vm746, %v730, 0
      %v784 = vsel %vm746, %v731, 0
      %v787 = vsel %vm746, %v732, 0
      %v790 = vsel %vm746, %v733, 0
      %v793 = vsel %vm746, %v734, 0
      %795 = vmatprep.subr.mxu0 0.0
      %796 = vmatpush1.msra.mxu0 %v735
      %797 = vmatprep.subr.mxu0 0.0
      %798 = vmatpush1.msra.mxu0 %v736
      %799 = vmatprep.subr.mxu0 0.0
      %800 = vmatpush1.msra.mxu0 %v737
      %801 = vmatprep.subr.mxu0 0.0
      %802 = vmatpush1.msra.mxu0 %v738
      %803 = vmatprep.subr.mxu0 0.0
      %804 = vmatpush1.msra.mxu0 0.0
      %805 = vmatprep.subr.mxu0 0.0
      %806 = vmatpush1.msra.mxu0 0.0
      %807 = vmatprep.subr.mxu0 0.0
      %808 = vmatpush1.msra.mxu0 0.0
      %809 = vmatprep.subr.mxu0 0.0
      %810 = vmatpush1.msra.mxu0 0.0
      %811 = vmatprep.subr.mxu0 0.0
      %812 = vmatpush1.msra.mxu0 0.0
      %813 = vmatprep.subr.mxu0 0.0
      %814 = vmatpush1.msra.mxu0 0.0
      %815 = vmatprep.subr.mxu0 0.0
      %816 = vmatpush1.msra.mxu0 0.0
      %817 = vmatprep.subr.mxu0 0.0
      %818 = vmatpush1.msra.mxu0 0.0
      %819 = vmatprep.subr.mxu0 0.0
      %820 = vmatpush1.msra.mxu0 0.0
      %821 = vmatprep.subr.mxu0 0.0
      %822 = vmatpush1.msra.mxu0 0.0
      %823 = vmatprep.subr.mxu0 0.0
      %824 = vmatpush1.msra.mxu0 0.0
      %825 = vmatprep.subr.mxu0 0.0
      %826 = vmatpush1.msra.mxu0 0.0
      %827 = vmatprep.subr.mxu0 0.0
      %828 = vmatpush1.msra.mxu0 0.0
      %829 = vmatprep.subr.mxu0 0.0
      %830 = vmatpush1.msra.mxu0 0.0
      %831 = vmatprep.subr.mxu0 0.0
      %832 = vmatpush1.msra.mxu0 0.0
      %833 = vmatprep.subr.mxu0 0.0
      %834 = vmatpush1.msra.mxu0 0.0
      %835 = vmatprep.subr.mxu0 0.0
      %836 = vmatpush1.msra.mxu0 0.0
      %837 = vmatprep.subr.mxu0 0.0
      %838 = vmatpush1.msra.mxu0 0.0
      %839 = vmatprep.subr.mxu0 0.0
      %840 = vmatpush1.msra.mxu0 0.0
      %841 = vmatprep.subr.mxu0 0.0
      %842 = vmatpush1.msra.mxu0 0.0
      %843 = vmatprep.subr.mxu0 0.0
      %844 = vmatpush1.msra.mxu0 0.0
      %845 = vmatprep.subr.mxu0 0.0
      %846 = vmatpush1.msra.mxu0 0.0
      %847 = vmatprep.subr.mxu0 0.0
      %848 = vmatpush1.msra.mxu0 0.0
      %849 = vmatprep.subr.mxu0 0.0
      %850 = vmatpush1.msra.mxu0 0.0
      %851 = vmatprep.subr.mxu0 0.0
      %852 = vmatpush1.msra.mxu0 0.0
      %853 = vmatprep.subr.mxu0 0.0
      %854 = vmatpush1.msra.mxu0 0.0
      %855 = vmatprep.subr.mxu0 0.0
      %856 = vmatpush1.msra.mxu0 0.0
      %857 = vmatprep.subr.mxu0 0.0
      %858 = vmatpush1.msra.mxu0 0.0
      %859 = vmatprep.mubr.f32.mxu0 0.0
      %860 = vmatmul.mubr.f32.gmra.mrb[0].mxu0 %v748
      %v861 = vpop.f32.mrb[0].mxu0
      %v862 = vadd.f32 %v744, %v861
      %v863 = vpop.f32.mrb[0].mxu0
      %864 = vmatprep.mubr.f32.mxu0 0.0
      %865 = vmatmul.mubr.f32.gmra.mrb[0].mxu0 %v751
      %v866 = vpop.f32.mrb[0].mxu0
      %v867 = vadd.f32 %v744, %v866
      %v868 = vpop.f32.mrb[0].mxu0
      %869 = vmatprep.mubr.f32.mxu0 0.0
      %870 = vmatmul.mubr.f32.gmra.mrb[0].mxu0 %v754
      %v871 = vpop.f32.mrb[0].mxu0
      %v872 = vadd.f32 %v744, %v871
      %v873 = vpop.f32.mrb[0].mxu0
      %874 = vmatprep.mubr.f32.mxu0 0.0
      %875 = vmatmul.mubr.f32.gmra.mrb[0].mxu0 %v757
      %v876 = vpop.f32.mrb[0].mxu0
      %v877 = vadd.f32 %v744, %v876
      %v878 = vpop.f32.mrb[0].mxu0
      %879 = vmatprep.mubr.f32.mxu0 0.0
      %880 = vmatmul.mubr.f32.gmra.mrb[0].mxu0 %v760
      %v881 = vpop.f32.mrb[0].mxu0
      %v882 = vadd.f32 %v744, %v881
      %v883 = vpop.f32.mrb[0].mxu0
      %884 = vmatprep.mubr.f32.mxu0 0.0
      %885 = vmatmul.mubr.f32.gmra.mrb[0].mxu0 %v763
      %v886 = vpop.f32.mrb[0].mxu0
      %v887 = vadd.f32 %v744, %v886
      %v888 = vpop.f32.mrb[0].mxu0
      %889 = vmatprep.mubr.f32.mxu0 0.0
      %890 = vmatmul.mubr.f32.gmra.mrb[0].mxu0 %v766
      %v891 = vpop.f32.mrb[0].mxu0
      %v892 = vadd.f32 %v744, %v891
      %v893 = vpop.f32.mrb[0].mxu0
      %894 = vmatprep.mubr.f32.mxu0 0.0
      %895 = vmatmul.mubr.f32.gmra.mrb[0].mxu0 %v769
      %v896 = vpop.f32.mrb[0].mxu0
      %v897 = vadd.f32 %v744, %v896
      %v898 = vpop.f32.mrb[0].mxu0
      %899 = vmatprep.mubr.f32.mxu0 0.0
      %900 = vmatmul.mubr.f32.gmra.mrb[0].mxu0 %v772
      %v901 = vpop.f32.mrb[0].mxu0
      %v902 = vadd.f32 %v744, %v901
      %v903 = vpop.f32.mrb[0].mxu0
      %904 = vmatprep.mubr.f32.mxu0 0.0
      %905 = vmatmul.mubr.f32.gmra.mrb[0].mxu0 %v775
      %v906 = vpop.f32.mrb[0].mxu0
      %v907 = vadd.f32 %v744, %v906
      %v908 = vpop.f32.mrb[0].mxu0
      %909 = vmatprep.mubr.f32.mxu0 0.0
      %910 = vmatmul.mubr.f32.gmra.mrb[0].mxu0 %v778
      %v911 = vpop.f32.mrb[0].mxu0
      %v912 = vadd.f32 %v744, %v911
      %v913 = vpop.f32.mrb[0].mxu0
      %914 = vmatprep.mubr.f32.mxu0 0.0
      %915 = vmatmul.mubr.f32.gmra.mrb[0].mxu0 %v781
      %v916 = vpop.f32.mrb[0].mxu0
      %v917 = vadd.f32 %v744, %v916
      %v918 = vpop.f32.mrb[0].mxu0
      %919 = vmatprep.mubr.f32.mxu0 0.0
      %920 = vmatmul.mubr.f32.gmra.mrb[0].mxu0 %v784
      %v921 = vpop.f32.mrb[0].mxu0
      %v922 = vadd.f32 %v744, %v921
      %v923 = vpop.f32.mrb[0].mxu0
      %924 = vmatprep.mubr.f32.mxu0 0.0
      %925 = vmatmul.mubr.f32.gmra.mrb[0].mxu0 %v787
      %v926 = vpop.f32.mrb[0].mxu0
      %v927 = vadd.f32 %v744, %v926
      %v928 = vpop.f32.mrb[0].mxu0
      %929 = vmatprep.mubr.f32.mxu0 0.0
      %930 = vmatmul.mubr.f32.gmra.mrb[0].mxu0 %v790
      %v931 = vpop.f32.mrb[0].mxu0
      %v932 = vadd.f32 %v744, %v931
      %v933 = vpop.f32.mrb[0].mxu0
      %934 = vmatprep.mubr.f32.mxu0 0.0
      %935 = vmatmul.mubr.f32.gmra.mrb[0].mxu0 %v793
      %v936 = vpop.f32.mrb[0].mxu0
      %v937 = vadd.f32 %v744, %v936
      %v938 = vpop.f32.mrb[0].mxu0
      %939 = vdwg.mxu0
      %v940 = vmax.f32 %v862, 0.0
      %v941 = vmax.f32 %v867, 0.0
      %v942 = vmax.f32 %v872, 0.0
      %v943 = vmax.f32 %v877, 0.0
      %v944 = vmax.f32 %v882, 0.0
      %v945 = vmax.f32 %v887, 0.0
      %v946 = vmax.f32 %v892, 0.0
      %v947 = vmax.f32 %v897, 0.0
      %v948 = vmax.f32 %v902, 0.0
      %v949 = vmax.f32 %v907, 0.0
      %v950 = vmax.f32 %v912, 0.0
      %v951 = vmax.f32 %v917, 0.0
      %v952 = vmax.f32 %v922, 0.0
      %v953 = vmax.f32 %v927, 0.0
      %v954 = vmax.f32 %v932, 0.0
      %v955 = vmax.f32 %v937, 0.0
      %v956 = vld [vmem:[%s5] sm:$0xff]
      %v957 = vld [vmem:[%s5 + $0x8] sm:$0xff]
      %v958 = vld [vmem:[%s5 + $0x10] sm:$0xff]
      %v959 = vld [vmem:[%s5 + $0x18] sm:$0xff]
      %v960 = vld [vmem:[%s6] sm:$0x1]
      %v962 = vlaneseq
      %v963 = vshrl.u32 %v962, 7
      %v964 = vsub.s32 0, %v963
      %v965 = vrot.slane %v960, %v964
      %v968 = vsel %vm746, %v940, 0
      %v971 = vsel %vm746, %v941, 0
      %v974 = vsel %vm746, %v942, 0
      %v977 = vsel %vm746, %v943, 0
      %v980 = vsel %vm746, %v944, 0
      %v983 = vsel %vm746, %v945, 0
      %v986 = vsel %vm746, %v946, 0
      %v989 = vsel %vm746, %v947, 0
      %v992 = vsel %vm746, %v948, 0
      %v995 = vsel %vm746, %v949, 0
      %v998 = vsel %vm746, %v950, 0
      %v1001 = vsel %vm746, %v951, 0
      %v1004 = vsel %vm746, %v952, 0
      %v1007 = vsel %vm746, %v953, 0
      %v1010 = vsel %vm746, %v954, 0
      %v1013 = vsel %vm746, %v955, 0
      %1015 = vmatprep.subr.mxu0 0.0
      %1016 = vmatpush1.msra.mxu0 %v956
      %1017 = vmatprep.subr.mxu0 0.0
      %1018 = vmatpush1.msra.mxu0 %v957
      %1019 = vmatprep.subr.mxu0 0.0
      %1020 = vmatpush1.msra.mxu0 %v958
      %1021 = vmatprep.subr.mxu0 0.0
      %1022 = vmatpush1.msra.mxu0 %v959
      %1023 = vmatprep.subr.mxu0 0.0
      %1024 = vmatpush1.msra.mxu0 0.0
      %1025 = vmatprep.subr.mxu0 0.0
      %1026 = vmatpush1.msra.mxu0 0.0
      %1027 = vmatprep.subr.mxu0 0.0
      %1028 = vmatpush1.msra.mxu0 0.0
      %1029 = vmatprep.subr.mxu0 0.0
      %1030 = vmatpush1.msra.mxu0 0.0
      %1031 = vmatprep.subr.mxu0 0.0
      %1032 = vmatpush1.msra.mxu0 0.0
      %1033 = vmatprep.subr.mxu0 0.0
      %1034 = vmatpush1.msra.mxu0 0.0
      %1035 = vmatprep.subr.mxu0 0.0
      %1036 = vmatpush1.msra.mxu0 0.0
      %1037 = vmatprep.subr.mxu0 0.0
      %1038 = vmatpush1.msra.mxu0 0.0
      %1039 = vmatprep.subr.mxu0 0.0
      %1040 = vmatpush1.msra.mxu0 0.0
      %1041 = vmatprep.subr.mxu0 0.0
      %1042 = vmatpush1.msra.mxu0 0.0
      %1043 = vmatprep.subr.mxu0 0.0
      %1044 = vmatpush1.msra.mxu0 0.0
      %1045 = vmatprep.subr.mxu0 0.0
      %1046 = vmatpush1.msra.mxu0 0.0
      %1047 = vmatprep.subr.mxu0 0.0
      %1048 = vmatpush1.msra.mxu0 0.0
      %1049 = vmatprep.subr.mxu0 0.0
      %1050 = vmatpush1.msra.mxu0 0.0
      %1051 = vmatprep.subr.mxu0 0.0
      %1052 = vmatpush1.msra.mxu0 0.0
      %1053 = vmatprep.subr.mxu0 0.0
      %1054 = vmatpush1.msra.mxu0 0.0
      %1055 = vmatprep.subr.mxu0 0.0
      %1056 = vmatpush1.msra.mxu0 0.0
      %1057 = vmatprep.subr.mxu0 0.0
      %1058 = vmatpush1.msra.mxu0 0.0
      %1059 = vmatprep.subr.mxu0 0.0
      %1060 = vmatpush1.msra.mxu0 0.0
      %1061 = vmatprep.subr.mxu0 0.0
      %1062 = vmatpush1.msra.mxu0 0.0
      %1063 = vmatprep.subr.mxu0 0.0
      %1064 = vmatpush1.msra.mxu0 0.0
      %1065 = vmatprep.subr.mxu0 0.0
      %1066 = vmatpush1.msra.mxu0 0.0
      %1067 = vmatprep.subr.mxu0 0.0
      %1068 = vmatpush1.msra.mxu0 0.0
      %1069 = vmatprep.subr.mxu0 0.0
      %1070 = vmatpush1.msra.mxu0 0.0
      %1071 = vmatprep.subr.mxu0 0.0
      %1072 = vmatpush1.msra.mxu0 0.0
      %1073 = vmatprep.subr.mxu0 0.0
      %1074 = vmatpush1.msra.mxu0 0.0
      %1075 = vmatprep.subr.mxu0 0.0
      %1076 = vmatpush1.msra.mxu0 0.0
      %1077 = vmatprep.subr.mxu0 0.0
      %1078 = vmatpush1.msra.mxu0 0.0
      %1079 = vmatprep.mubr.f32.mxu0 0.0
      %1080 = vmatmul.mubr.f32.gmra.mrb[0].mxu0 %v968
      %v1081 = vpop.f32.mrb[0].mxu0
      %v1082 = vadd.f32 %v965, %v1081
      %v1083 = vpop.f32.mrb[0].mxu0
      %1084 = vmatprep.mubr.f32.mxu0 0.0
      %1085 = vmatmul.mubr.f32.gmra.mrb[0].mxu0 %v971
      %v1086 = vpop.f32.mrb[0].mxu0
      %v1087 = vadd.f32 %v965, %v1086
      %v1088 = vpop.f32.mrb[0].mxu0
      %1089 = vmatprep.mubr.f32.mxu0 0.0
      %1090 = vmatmul.mubr.f32.gmra.mrb[0].mxu0 %v974
      %v1091 = vpop.f32.mrb[0].mxu0
      %v1092 = vadd.f32 %v965, %v1091
      %v1093 = vpop.f32.mrb[0].mxu0
      %1094 = vmatprep.mubr.f32.mxu0 0.0
      %1095 = vmatmul.mubr.f32.gmra.mrb[0].mxu0 %v977
      %v1096 = vpop.f32.mrb[0].mxu0
      %v1097 = vadd.f32 %v965, %v1096
      %v1098 = vpop.f32.mrb[0].mxu0
      %1099 = vmatprep.mubr.f32.mxu0 0.0
      %1100 = vmatmul.mubr.f32.gmra.mrb[0].mxu0 %v980
      %v1101 = vpop.f32.mrb[0].mxu0
      %v1102 = vadd.f32 %v965, %v1101
      %v1103 = vpop.f32.mrb[0].mxu0
      %1104 = vmatprep.mubr.f32.mxu0 0.0
      %1105 = vmatmul.mubr.f32.gmra.mrb[0].mxu0 %v983
      %v1106 = vpop.f32.mrb[0].mxu0
      %v1107 = vadd.f32 %v965, %v1106
      %v1108 = vpop.f32.mrb[0].mxu0
      %1109 = vmatprep.mubr.f32.mxu0 0.0
      %1110 = vmatmul.mubr.f32.gmra.mrb[0].mxu0 %v986
      %v1111 = vpop.f32.mrb[0].mxu0
      %v1112 = vadd.f32 %v965, %v1111
      %v1113 = vpop.f32.mrb[0].mxu0
      %1114 = vmatprep.mubr.f32.mxu0 0.0
      %1115 = vmatmul.mubr.f32.gmra.mrb[0].mxu0 %v989
      %v1116 = vpop.f32.mrb[0].mxu0
      %v1117 = vadd.f32 %v965, %v1116
      %v1118 = vpop.f32.mrb[0].mxu0
      %1119 = vmatprep.mubr.f32.mxu0 0.0
      %1120 = vmatmul.mubr.f32.gmra.mrb[0].mxu0 %v992
      %v1121 = vpop.f32.mrb[0].mxu0
      %v1122 = vadd.f32 %v965, %v1121
      %v1123 = vpop.f32.mrb[0].mxu0
      %1124 = vmatprep.mubr.f32.mxu0 0.0
      %1125 = vmatmul.mubr.f32.gmra.mrb[0].mxu0 %v995
      %v1126 = vpop.f32.mrb[0].mxu0
      %v1127 = vadd.f32 %v965, %v1126
      %v1128 = vpop.f32.mrb[0].mxu0
      %1129 = vmatprep.mubr.f32.mxu0 0.0
      %1130 = vmatmul.mubr.f32.gmra.mrb[0].mxu0 %v998
      %v1131 = vpop.f32.mrb[0].mxu0
      %v1132 = vadd.f32 %v965, %v1131
      %v1133 = vpop.f32.mrb[0].mxu0
      %1134 = vmatprep.mubr.f32.mxu0 0.0
      %1135 = vmatmul.mubr.f32.gmra.mrb[0].mxu0 %v1001
      %v1136 = vpop.f32.mrb[0].mxu0
      %v1137 = vadd.f32 %v965, %v1136
      %v1138 = vpop.f32.mrb[0].mxu0
      %1139 = vmatprep.mubr.f32.mxu0 0.0
      %1140 = vmatmul.mubr.f32.gmra.mrb[0].mxu0 %v1004
      %v1141 = vpop.f32.mrb[0].mxu0
      %v1142 = vadd.f32 %v965, %v1141
      %v1143 = vpop.f32.mrb[0].mxu0
      %1144 = vmatprep.mubr.f32.mxu0 0.0
      %1145 = vmatmul.mubr.f32.gmra.mrb[0].mxu0 %v1007
      %v1146 = vpop.f32.mrb[0].mxu0
      %v1147 = vadd.f32 %v965, %v1146
      %v1148 = vpop.f32.mrb[0].mxu0
      %1149 = vmatprep.mubr.f32.mxu0 0.0
      %1150 = vmatmul.mubr.f32.gmra.mrb[0].mxu0 %v1010
      %v1151 = vpop.f32.mrb[0].mxu0
      %v1152 = vadd.f32 %v965, %v1151
      %v1153 = vpop.f32.mrb[0].mxu0
      %1154 = vmatprep.mubr.f32.mxu0 0.0
      %1155 = vmatmul.mubr.f32.gmra.mrb[0].mxu0 %v1013
      %v1156 = vpop.f32.mrb[0].mxu0
      %v1157 = vadd.f32 %v965, %v1156
      %v1158 = vpop.f32.mrb[0].mxu0
      %1159 = vdwg.mxu0
      %v1160 = vtanh.pop %v1082
      %v1161 = vtanh.pop %v1087
      %v1162 = vtanh.pop %v1092
      %v1163 = vtanh.pop %v1097
      %v1164 = vtanh.pop %v1102
      %v1165 = vtanh.pop %v1107
      %v1166 = vtanh.pop %v1112
      %v1167 = vtanh.pop %v1117
      %v1168 = vtanh.pop %v1122
      %v1169 = vtanh.pop %v1127
      %v1170 = vtanh.pop %v1132
      %v1171 = vtanh.pop %v1137
      %v1172 = vtanh.pop %v1142
      %v1173 = vtanh.pop %v1147
      %v1174 = vtanh.pop %v1152
      %v1175 = vtanh.pop %v1157
      %v1176 = vld [vmem:[%s7] sm:$0x1]
      %v1178 = vlaneseq
      %v1179 = vshrl.u32 %v1178, 7
      %v1180 = vsub.s32 0, %v1179
      %v1181 = vrot.slane %v1176, %v1180
      %v1183 = vmul.f32 %v1160, %v1181
      %v1184 = vmul.f32 %v1161, %v1181
      %v1185 = vmul.f32 %v1162, %v1181
      %v1186 = vmul.f32 %v1163, %v1181
      %v1187 = vmul.f32 %v1164, %v1181
      %v1188 = vmul.f32 %v1165, %v1181
      %v1189 = vmul.f32 %v1166, %v1181
      %v1190 = vmul.f32 %v1167, %v1181
      %v1191 = vmul.f32 %v1168, %v1181
      %v1192 = vmul.f32 %v1169, %v1181
      %v1193 = vmul.f32 %v1170, %v1181
      %v1194 = vmul.f32 %v1171, %v1181
      %v1195 = vmul.f32 %v1172, %v1181
      %v1196 = vmul.f32 %v1173, %v1181
      %v1197 = vmul.f32 %v1174, %v1181
      %v1198 = vmul.f32 %v1175, %v1181
      %v1199 = vld [vmem:[%s8] sm:$0x1]
      %v1201 = vlaneseq
      %v1202 = vshrl.u32 %v1201, 7
      %v1203 = vsub.s32 0, %v1202
      %v1204 = vrot.slane %v1199, %v1203
      %v1206 = vadd.f32 %v1183, %v1204
      %v1207 = vadd.f32 %v1184, %v1204
      %v1208 = vadd.f32 %v1185, %v1204
      %v1209 = vadd.f32 %v1186, %v1204
      %v1210 = vadd.f32 %v1187, %v1204
      %v1211 = vadd.f32 %v1188, %v1204
      %v1212 = vadd.f32 %v1189, %v1204
      %v1213 = vadd.f32 %v1190, %v1204
      %v1214 = vadd.f32 %v1191, %v1204
      %v1215 = vadd.f32 %v1192, %v1204
      %v1216 = vadd.f32 %v1193, %v1204
      %v1217 = vadd.f32 %v1194, %v1204
      %v1218 = vadd.f32 %v1195, %v1204
      %v1219 = vadd.f32 %v1196, %v1204
      %v1220 = vadd.f32 %v1197, %v1204
      %v1221 = vadd.f32 %v1198, %v1204
      %1222 = vst.msk [vmem:[#allocation2] sm:$0xff] %vm525, %v500
      %1223 = vst.msk [vmem:[#allocation2 + $0x8] sm:$0xff] %vm525, %v501
      %1224 = vst.msk [vmem:[#allocation2 + $0x10] sm:$0xff] %vm525, %v502
      %1225 = vst.msk [vmem:[#allocation2 + $0x18] sm:$0xff] %vm525, %v503
      %1226 = vst.msk [vmem:[#allocation2 + $0x20] sm:$0xff] %vm525, %v504
      %1227 = vst.msk [vmem:[#allocation2 + $0x28] sm:$0xff] %vm525, %v505
      %1228 = vst.msk [vmem:[#allocation2 + $0x30] sm:$0xff] %vm525, %v506
      %1229 = vst.msk [vmem:[#allocation2 + $0x38] sm:$0xff] %vm525, %v507
      %1230 = vst.msk [vmem:[#allocation2 + $0x40] sm:$0xff] %vm525, %v508
      %1231 = vst.msk [vmem:[#allocation2 + $0x48] sm:$0xff] %vm525, %v509
      %1232 = vst.msk [vmem:[#allocation2 + $0x50] sm:$0xff] %vm525, %v510
      %1233 = vst.msk [vmem:[#allocation2 + $0x58] sm:$0xff] %vm525, %v511
      %1234 = vst.msk [vmem:[#allocation2 + $0x60] sm:$0xff] %vm525, %v512
      %1235 = vst.msk [vmem:[#allocation2 + $0x68] sm:$0xff] %vm525, %v513
      %1236 = vst.msk [vmem:[#allocation2 + $0x70] sm:$0xff] %vm525, %v514
      %1237 = vst.msk [vmem:[#allocation2 + $0x78] sm:$0xff] %vm525, %v515
      %1254 = vrot.lane.b32.xlu0 %v1206, 16
      %v1255 = vpop.permute.xlu0 %1254
      %1256 = vrot.lane.b32.xlu0 %v1207, 16
      %v1257 = vpop.permute.xlu0 %1256
      %1258 = vrot.lane.b32.xlu0 %v1208, 16
      %v1259 = vpop.permute.xlu0 %1258
      %1260 = vrot.lane.b32.xlu0 %v1209, 16
      %v1261 = vpop.permute.xlu0 %1260
      %1262 = vrot.lane.b32.xlu0 %v1210, 16
      %v1263 = vpop.permute.xlu0 %1262
      %1264 = vrot.lane.b32.xlu0 %v1211, 16
      %v1265 = vpop.permute.xlu0 %1264
      %1266 = vrot.lane.b32.xlu0 %v1212, 16
      %v1267 = vpop.permute.xlu0 %1266
      %1268 = vrot.lane.b32.xlu0 %v1213, 16
      %v1269 = vpop.permute.xlu0 %1268
      %1270 = vrot.lane.b32.xlu0 %v1214, 16
      %v1271 = vpop.permute.xlu0 %1270
      %1272 = vrot.lane.b32.xlu0 %v1215, 16
      %v1273 = vpop.permute.xlu0 %1272
      %1274 = vrot.lane.b32.xlu0 %v1216, 16
      %v1275 = vpop.permute.xlu0 %1274
      %1276 = vrot.lane.b32.xlu0 %v1217, 16
      %v1277 = vpop.permute.xlu0 %1276
      %1278 = vrot.lane.b32.xlu0 %v1218, 16
      %v1279 = vpop.permute.xlu0 %1278
      %1280 = vrot.lane.b32.xlu0 %v1219, 16
      %v1281 = vpop.permute.xlu0 %1280
      %1282 = vrot.lane.b32.xlu0 %v1220, 16
      %v1283 = vpop.permute.xlu0 %1282
      %1284 = vrot.lane.b32.xlu0 %v1221, 16
      %v1285 = vpop.permute.xlu0 %1284
      %vm1302 = vcmask 162944
      %1303 = vst.msk [vmem:[#allocation2] sm:$0xff] %vm1302, %v1255
      %1304 = vst.msk [vmem:[#allocation2 + $0x8] sm:$0xff] %vm1302, %v1257
      %1305 = vst.msk [vmem:[#allocation2 + $0x10] sm:$0xff] %vm1302, %v1259
      %1306 = vst.msk [vmem:[#allocation2 + $0x18] sm:$0xff] %vm1302, %v1261
      %1307 = vst.msk [vmem:[#allocation2 + $0x20] sm:$0xff] %vm1302, %v1263
      %1308 = vst.msk [vmem:[#allocation2 + $0x28] sm:$0xff] %vm1302, %v1265
      %1309 = vst.msk [vmem:[#allocation2 + $0x30] sm:$0xff] %vm1302, %v1267
      %1310 = vst.msk [vmem:[#allocation2 + $0x38] sm:$0xff] %vm1302, %v1269
      %1311 = vst.msk [vmem:[#allocation2 + $0x40] sm:$0xff] %vm1302, %v1271
      %1312 = vst.msk [vmem:[#allocation2 + $0x48] sm:$0xff] %vm1302, %v1273
      %1313 = vst.msk [vmem:[#allocation2 + $0x50] sm:$0xff] %vm1302, %v1275
      %1314 = vst.msk [vmem:[#allocation2 + $0x58] sm:$0xff] %vm1302, %v1277
      %1315 = vst.msk [vmem:[#allocation2 + $0x60] sm:$0xff] %vm1302, %v1279
      %1316 = vst.msk [vmem:[#allocation2 + $0x68] sm:$0xff] %vm1302, %v1281
      %1317 = vst.msk [vmem:[#allocation2 + $0x70] sm:$0xff] %vm1302, %v1283
      %1318 = vst.msk [vmem:[#allocation2 + $0x78] sm:$0xff] %vm1302, %v1285
      %v1319 = vld [vmem:[#allocation2] sm:$0xff]
      %v1320 = vld [vmem:[#allocation2 + $0x8] sm:$0xff]
      %v1321 = vld [vmem:[#allocation2 + $0x10] sm:$0xff]
      %v1322 = vld [vmem:[#allocation2 + $0x18] sm:$0xff]
      %v1323 = vld [vmem:[#allocation2 + $0x20] sm:$0xff]
      %v1324 = vld [vmem:[#allocation2 + $0x28] sm:$0xff]
      %v1325 = vld [vmem:[#allocation2 + $0x30] sm:$0xff]
      %v1326 = vld [vmem:[#allocation2 + $0x38] sm:$0xff]
      %v1327 = vld [vmem:[#allocation2 + $0x40] sm:$0xff]
      %v1328 = vld [vmem:[#allocation2 + $0x48] sm:$0xff]
      %v1329 = vld [vmem:[#allocation2 + $0x50] sm:$0xff]
      %v1330 = vld [vmem:[#allocation2 + $0x58] sm:$0xff]
      %v1331 = vld [vmem:[#allocation2 + $0x60] sm:$0xff]
      %v1332 = vld [vmem:[#allocation2 + $0x68] sm:$0xff]
      %v1333 = vld [vmem:[#allocation2 + $0x70] sm:$0xff]
      %v1334 = vld [vmem:[#allocation2 + $0x78] sm:$0xff]
      %v1335 = vld [vmem:[%s9] sm:$0xff]
      %v1336 = vld [vmem:[%s9 + $0x8] sm:$0xff]
      %v1337 = vld [vmem:[%s9 + $0x10] sm:$0xf]
      %v1338 = vld [vmem:[%s10] sm:$0x1]
      %v1340 = vlaneseq
      %v1341 = vshrl.u32 %v1340, 7
      %v1342 = vsub.s32 0, %v1341
      %v1343 = vrot.slane %v1338, %v1342
      %vm1345 = vcmask 162816
      %v1347 = vsel %vm1345, %v1319, 0
      %v1350 = vsel %vm1345, %v1320, 0
      %v1353 = vsel %vm1345, %v1321, 0
      %v1356 = vsel %vm1345, %v1322, 0
      %v1359 = vsel %vm1345, %v1323, 0
      %v1362 = vsel %vm1345, %v1324, 0
      %v1365 = vsel %vm1345, %v1325, 0
      %v1368 = vsel %vm1345, %v1326, 0
      %v1371 = vsel %vm1345, %v1327, 0
      %v1374 = vsel %vm1345, %v1328, 0
      %v1377 = vsel %vm1345, %v1329, 0
      %v1380 = vsel %vm1345, %v1330, 0
      %v1383 = vsel %vm1345, %v1331, 0
      %v1386 = vsel %vm1345, %v1332, 0
      %v1389 = vsel %vm1345, %v1333, 0
      %v1392 = vsel %vm1345, %v1334, 0
      %vm1394 = vcmask 1043456
      %v1396 = vsel %vm1394, %v1337, 0
      %1398 = vmatprep.subr.mxu0 0.0
      %1399 = vmatpush1.msra.mxu0 %v1335
      %1400 = vmatprep.subr.mxu0 0.0
      %1401 = vmatpush1.msra.mxu0 %v1336
      %1402 = vmatprep.subr.mxu0 0.0
      %1403 = vmatpush1.msra.mxu0 %v1396
      %1404 = vmatprep.subr.mxu0 0.0
      %1405 = vmatpush1.msra.mxu0 0.0
      %1406 = vmatprep.subr.mxu0 0.0
      %1407 = vmatpush1.msra.mxu0 0.0
      %1408 = vmatprep.subr.mxu0 0.0
      %1409 = vmatpush1.msra.mxu0 0.0
      %1410 = vmatprep.subr.mxu0 0.0
      %1411 = vmatpush1.msra.mxu0 0.0
      %1412 = vmatprep.subr.mxu0 0.0
      %1413 = vmatpush1.msra.mxu0 0.0
      %1414 = vmatprep.subr.mxu0 0.0
      %1415 = vmatpush1.msra.mxu0 0.0
      %1416 = vmatprep.subr.mxu0 0.0
      %1417 = vmatpush1.msra.mxu0 0.0
      %1418 = vmatprep.subr.mxu0 0.0
      %1419 = vmatpush1.msra.mxu0 0.0
      %1420 = vmatprep.subr.mxu0 0.0
      %1421 = vmatpush1.msra.mxu0 0.0
      %1422 = vmatprep.subr.mxu0 0.0
      %1423 = vmatpush1.msra.mxu0 0.0
      %1424 = vmatprep.subr.mxu0 0.0
      %1425 = vmatpush1.msra.mxu0 0.0
      %1426 = vmatprep.subr.mxu0 0.0
      %1427 = vmatpush1.msra.mxu0 0.0
      %1428 = vmatprep.subr.mxu0 0.0
      %1429 = vmatpush1.msra.mxu0 0.0
      %1430 = vmatprep.subr.mxu0 0.0
      %1431 = vmatpush1.msra.mxu0 0.0
      %1432 = vmatprep.subr.mxu0 0.0
      %1433 = vmatpush1.msra.mxu0 0.0
      %1434 = vmatprep.subr.mxu0 0.0
      %1435 = vmatpush1.msra.mxu0 0.0
      %1436 = vmatprep.subr.mxu0 0.0
      %1437 = vmatpush1.msra.mxu0 0.0
      %1438 = vmatprep.subr.mxu0 0.0
      %1439 = vmatpush1.msra.mxu0 0.0
      %1440 = vmatprep.subr.mxu0 0.0
      %1441 = vmatpush1.msra.mxu0 0.0
      %1442 = vmatprep.subr.mxu0 0.0
      %1443 = vmatpush1.msra.mxu0 0.0
      %1444 = vmatprep.subr.mxu0 0.0
      %1445 = vmatpush1.msra.mxu0 0.0
      %1446 = vmatprep.subr.mxu0 0.0
      %1447 = vmatpush1.msra.mxu0 0.0
      %1448 = vmatprep.subr.mxu0 0.0
      %1449 = vmatpush1.msra.mxu0 0.0
      %1450 = vmatprep.subr.mxu0 0.0
      %1451 = vmatpush1.msra.mxu0 0.0
      %1452 = vmatprep.subr.mxu0 0.0
      %1453 = vmatpush1.msra.mxu0 0.0
      %1454 = vmatprep.subr.mxu0 0.0
      %1455 = vmatpush1.msra.mxu0 0.0
      %1456 = vmatprep.subr.mxu0 0.0
      %1457 = vmatpush1.msra.mxu0 0.0
      %1458 = vmatprep.subr.mxu0 0.0
      %1459 = vmatpush1.msra.mxu0 0.0
      %1460 = vmatprep.subr.mxu0 0.0
      %1461 = vmatpush1.msra.mxu0 0.0
      %1462 = vmatprep.mubr.f32.mxu0 0.0
      %1463 = vmatmul.mubr.f32.gmra.mrb[0].mxu0 %v1347
      %v1464 = vpop.f32.mrb[0].mxu0
      %v1465 = vadd.f32 %v1343, %v1464
      %v1466 = vpop.f32.mrb[0].mxu0
      %1467 = vmatprep.mubr.f32.mxu0 0.0
      %1468 = vmatmul.mubr.f32.gmra.mrb[0].mxu0 %v1350
      %v1469 = vpop.f32.mrb[0].mxu0
      %v1470 = vadd.f32 %v1343, %v1469
      %v1471 = vpop.f32.mrb[0].mxu0
      %1472 = vmatprep.mubr.f32.mxu0 0.0
      %1473 = vmatmul.mubr.f32.gmra.mrb[0].mxu0 %v1353
      %v1474 = vpop.f32.mrb[0].mxu0
      %v1475 = vadd.f32 %v1343, %v1474
      %v1476 = vpop.f32.mrb[0].mxu0
      %1477 = vmatprep.mubr.f32.mxu0 0.0
      %1478 = vmatmul.mubr.f32.gmra.mrb[0].mxu0 %v1356
      %v1479 = vpop.f32.mrb[0].mxu0
      %v1480 = vadd.f32 %v1343, %v1479
      %v1481 = vpop.f32.mrb[0].mxu0
      %1482 = vmatprep.mubr.f32.mxu0 0.0
      %1483 = vmatmul.mubr.f32.gmra.mrb[0].mxu0 %v1359
      %v1484 = vpop.f32.mrb[0].mxu0
      %v1485 = vadd.f32 %v1343, %v1484
      %v1486 = vpop.f32.mrb[0].mxu0
      %1487 = vmatprep.mubr.f32.mxu0 0.0
      %1488 = vmatmul.mubr.f32.gmra.mrb[0].mxu0 %v1362
      %v1489 = vpop.f32.mrb[0].mxu0
      %v1490 = vadd.f32 %v1343, %v1489
      %v1491 = vpop.f32.mrb[0].mxu0
      %1492 = vmatprep.mubr.f32.mxu0 0.0
      %1493 = vmatmul.mubr.f32.gmra.mrb[0].mxu0 %v1365
      %v1494 = vpop.f32.mrb[0].mxu0
      %v1495 = vadd.f32 %v1343, %v1494
      %v1496 = vpop.f32.mrb[0].mxu0
      %1497 = vmatprep.mubr.f32.mxu0 0.0
      %1498 = vmatmul.mubr.f32.gmra.mrb[0].mxu0 %v1368
      %v1499 = vpop.f32.mrb[0].mxu0
      %v1500 = vadd.f32 %v1343, %v1499
      %v1501 = vpop.f32.mrb[0].mxu0
      %1502 = vmatprep.mubr.f32.mxu0 0.0
      %1503 = vmatmul.mubr.f32.gmra.mrb[0].mxu0 %v1371
      %v1504 = vpop.f32.mrb[0].mxu0
      %v1505 = vadd.f32 %v1343, %v1504
      %v1506 = vpop.f32.mrb[0].mxu0
      %1507 = vmatprep.mubr.f32.mxu0 0.0
      %1508 = vmatmul.mubr.f32.gmra.mrb[0].mxu0 %v1374
      %v1509 = vpop.f32.mrb[0].mxu0
      %v1510 = vadd.f32 %v1343, %v1509
      %v1511 = vpop.f32.mrb[0].mxu0
      %1512 = vmatprep.mubr.f32.mxu0 0.0
      %1513 = vmatmul.mubr.f32.gmra.mrb[0].mxu0 %v1377
      %v1514 = vpop.f32.mrb[0].mxu0
      %v1515 = vadd.f32 %v1343, %v1514
      %v1516 = vpop.f32.mrb[0].mxu0
      %1517 = vmatprep.mubr.f32.mxu0 0.0
      %1518 = vmatmul.mubr.f32.gmra.mrb[0].mxu0 %v1380
      %v1519 = vpop.f32.mrb[0].mxu0
      %v1520 = vadd.f32 %v1343, %v1519
      %v1521 = vpop.f32.mrb[0].mxu0
      %1522 = vmatprep.mubr.f32.mxu0 0.0
      %1523 = vmatmul.mubr.f32.gmra.mrb[0].mxu0 %v1383
      %v1524 = vpop.f32.mrb[0].mxu0
      %v1525 = vadd.f32 %v1343, %v1524
      %v1526 = vpop.f32.mrb[0].mxu0
      %1527 = vmatprep.mubr.f32.mxu0 0.0
      %1528 = vmatmul.mubr.f32.gmra.mrb[0].mxu0 %v1386
      %v1529 = vpop.f32.mrb[0].mxu0
      %v1530 = vadd.f32 %v1343, %v1529
      %v1531 = vpop.f32.mrb[0].mxu0
      %1532 = vmatprep.mubr.f32.mxu0 0.0
      %1533 = vmatmul.mubr.f32.gmra.mrb[0].mxu0 %v1389
      %v1534 = vpop.f32.mrb[0].mxu0
      %v1535 = vadd.f32 %v1343, %v1534
      %v1536 = vpop.f32.mrb[0].mxu0
      %1537 = vmatprep.mubr.f32.mxu0 0.0
      %1538 = vmatmul.mubr.f32.gmra.mrb[0].mxu0 %v1392
      %v1539 = vpop.f32.mrb[0].mxu0
      %v1540 = vadd.f32 %v1343, %v1539
      %v1541 = vpop.f32.mrb[0].mxu0
      %1542 = vdwg.mxu0
      %v1543 = vmax.f32 %v1465, 0.0
      %v1544 = vmax.f32 %v1470, 0.0
      %v1545 = vmax.f32 %v1475, 0.0
      %v1546 = vmax.f32 %v1480, 0.0
      %v1547 = vmax.f32 %v1485, 0.0
      %v1548 = vmax.f32 %v1490, 0.0
      %v1549 = vmax.f32 %v1495, 0.0
      %v1550 = vmax.f32 %v1500, 0.0
      %v1551 = vmax.f32 %v1505, 0.0
      %v1552 = vmax.f32 %v1510, 0.0
      %v1553 = vmax.f32 %v1515, 0.0
      %v1554 = vmax.f32 %v1520, 0.0
      %v1555 = vmax.f32 %v1525, 0.0
      %v1556 = vmax.f32 %v1530, 0.0
      %v1557 = vmax.f32 %v1535, 0.0
      %v1558 = vmax.f32 %v1540, 0.0
      %v1559 = vld [vmem:[%s11] sm:$0xff]
      %v1560 = vld [vmem:[%s11 + $0x8] sm:$0xff]
      %v1561 = vld [vmem:[%s11 + $0x10] sm:$0xff]
      %v1562 = vld [vmem:[%s11 + $0x18] sm:$0xff]
      %v1563 = vld [vmem:[%s12] sm:$0x1]
      %v1565 = vlaneseq
      %v1566 = vshrl.u32 %v1565, 7
      %v1567 = vsub.s32 0, %v1566
      %v1568 = vrot.slane %v1563, %v1567
      %v1571 = vsel %vm746, %v1543, 0
      %v1574 = vsel %vm746, %v1544, 0
      %v1577 = vsel %vm746, %v1545, 0
      %v1580 = vsel %vm746, %v1546, 0
      %v1583 = vsel %vm746, %v1547, 0
      %v1586 = vsel %vm746, %v1548, 0
      %v1589 = vsel %vm746, %v1549, 0
      %v1592 = vsel %vm746, %v1550, 0
      %v1595 = vsel %vm746, %v1551, 0
      %v1598 = vsel %vm746, %v1552, 0
      %v1601 = vsel %vm746, %v1553, 0
      %v1604 = vsel %vm746, %v1554, 0
      %v1607 = vsel %vm746, %v1555, 0
      %v1610 = vsel %vm746, %v1556, 0
      %v1613 = vsel %vm746, %v1557, 0
      %v1616 = vsel %vm746, %v1558, 0
      %1618 = vmatprep.subr.mxu0 0.0
      %1619 = vmatpush1.msra.mxu0 %v1559
      %1620 = vmatprep.subr.mxu0 0.0
      %1621 = vmatpush1.msra.mxu0 %v1560
      %1622 = vmatprep.subr.mxu0 0.0
      %1623 = vmatpush1.msra.mxu0 %v1561
      %1624 = vmatprep.subr.mxu0 0.0
      %1625 = vmatpush1.msra.mxu0 %v1562
      %1626 = vmatprep.subr.mxu0 0.0
      %1627 = vmatpush1.msra.mxu0 0.0
      %1628 = vmatprep.subr.mxu0 0.0
      %1629 = vmatpush1.msra.mxu0 0.0
      %1630 = vmatprep.subr.mxu0 0.0
      %1631 = vmatpush1.msra.mxu0 0.0
      %1632 = vmatprep.subr.mxu0 0.0
      %1633 = vmatpush1.msra.mxu0 0.0
      %1634 = vmatprep.subr.mxu0 0.0
      %1635 = vmatpush1.msra.mxu0 0.0
      %1636 = vmatprep.subr.mxu0 0.0
      %1637 = vmatpush1.msra.mxu0 0.0
      %1638 = vmatprep.subr.mxu0 0.0
      %1639 = vmatpush1.msra.mxu0 0.0
      %1640 = vmatprep.subr.mxu0 0.0
      %1641 = vmatpush1.msra.mxu0 0.0
      %1642 = vmatprep.subr.mxu0 0.0
      %1643 = vmatpush1.msra.mxu0 0.0
      %1644 = vmatprep.subr.mxu0 0.0
      %1645 = vmatpush1.msra.mxu0 0.0
      %1646 = vmatprep.subr.mxu0 0.0
      %1647 = vmatpush1.msra.mxu0 0.0
      %1648 = vmatprep.subr.mxu0 0.0
      %1649 = vmatpush1.msra.mxu0 0.0
      %1650 = vmatprep.subr.mxu0 0.0
      %1651 = vmatpush1.msra.mxu0 0.0
      %1652 = vmatprep.subr.mxu0 0.0
      %1653 = vmatpush1.msra.mxu0 0.0
      %1654 = vmatprep.subr.mxu0 0.0
      %1655 = vmatpush1.msra.mxu0 0.0
      %1656 = vmatprep.subr.mxu0 0.0
      %1657 = vmatpush1.msra.mxu0 0.0
      %1658 = vmatprep.subr.mxu0 0.0
      %1659 = vmatpush1.msra.mxu0 0.0
      %1660 = vmatprep.subr.mxu0 0.0
      %1661 = vmatpush1.msra.mxu0 0.0
      %1662 = vmatprep.subr.mxu0 0.0
      %1663 = vmatpush1.msra.mxu0 0.0
      %1664 = vmatprep.subr.mxu0 0.0
      %1665 = vmatpush1.msra.mxu0 0.0
      %1666 = vmatprep.subr.mxu0 0.0
      %1667 = vmatpush1.msra.mxu0 0.0
      %1668 = vmatprep.subr.mxu0 0.0
      %1669 = vmatpush1.msra.mxu0 0.0
      %1670 = vmatprep.subr.mxu0 0.0
      %1671 = vmatpush1.msra.mxu0 0.0
      %1672 = vmatprep.subr.mxu0 0.0
      %1673 = vmatpush1.msra.mxu0 0.0
      %1674 = vmatprep.subr.mxu0 0.0
      %1675 = vmatpush1.msra.mxu0 0.0
      %1676 = vmatprep.subr.mxu0 0.0
      %1677 = vmatpush1.msra.mxu0 0.0
      %1678 = vmatprep.subr.mxu0 0.0
      %1679 = vmatpush1.msra.mxu0 0.0
      %1680 = vmatprep.subr.mxu0 0.0
      %1681 = vmatpush1.msra.mxu0 0.0
      %1682 = vmatprep.mubr.f32.mxu0 0.0
      %1683 = vmatmul.mubr.f32.gmra.mrb[0].mxu0 %v1571
      %v1684 = vpop.f32.mrb[0].mxu0
      %v1685 = vadd.f32 %v1568, %v1684
      %v1686 = vpop.f32.mrb[0].mxu0
      %1687 = vmatprep.mubr.f32.mxu0 0.0
      %1688 = vmatmul.mubr.f32.gmra.mrb[0].mxu0 %v1574
      %v1689 = vpop.f32.mrb[0].mxu0
      %v1690 = vadd.f32 %v1568, %v1689
      %v1691 = vpop.f32.mrb[0].mxu0
      %1692 = vmatprep.mubr.f32.mxu0 0.0
      %1693 = vmatmul.mubr.f32.gmra.mrb[0].mxu0 %v1577
      %v1694 = vpop.f32.mrb[0].mxu0
      %v1695 = vadd.f32 %v1568, %v1694
      %v1696 = vpop.f32.mrb[0].mxu0
      %1697 = vmatprep.mubr.f32.mxu0 0.0
      %1698 = vmatmul.mubr.f32.gmra.mrb[0].mxu0 %v1580
      %v1699 = vpop.f32.mrb[0].mxu0
      %v1700 = vadd.f32 %v1568, %v1699
      %v1701 = vpop.f32.mrb[0].mxu0
      %1702 = vmatprep.mubr.f32.mxu0 0.0
      %1703 = vmatmul.mubr.f32.gmra.mrb[0].mxu0 %v1583
      %v1704 = vpop.f32.mrb[0].mxu0
      %v1705 = vadd.f32 %v1568, %v1704
      %v1706 = vpop.f32.mrb[0].mxu0
      %1707 = vmatprep.mubr.f32.mxu0 0.0
      %1708 = vmatmul.mubr.f32.gmra.mrb[0].mxu0 %v1586
      %v1709 = vpop.f32.mrb[0].mxu0
      %v1710 = vadd.f32 %v1568, %v1709
      %v1711 = vpop.f32.mrb[0].mxu0
      %1712 = vmatprep.mubr.f32.mxu0 0.0
      %1713 = vmatmul.mubr.f32.gmra.mrb[0].mxu0 %v1589
      %v1714 = vpop.f32.mrb[0].mxu0
      %v1715 = vadd.f32 %v1568, %v1714
      %v1716 = vpop.f32.mrb[0].mxu0
      %1717 = vmatprep.mubr.f32.mxu0 0.0
      %1718 = vmatmul.mubr.f32.gmra.mrb[0].mxu0 %v1592
      %v1719 = vpop.f32.mrb[0].mxu0
      %v1720 = vadd.f32 %v1568, %v1719
      %v1721 = vpop.f32.mrb[0].mxu0
      %1722 = vmatprep.mubr.f32.mxu0 0.0
      %1723 = vmatmul.mubr.f32.gmra.mrb[0].mxu0 %v1595
      %v1724 = vpop.f32.mrb[0].mxu0
      %v1725 = vadd.f32 %v1568, %v1724
      %v1726 = vpop.f32.mrb[0].mxu0
      %1727 = vmatprep.mubr.f32.mxu0 0.0
      %1728 = vmatmul.mubr.f32.gmra.mrb[0].mxu0 %v1598
      %v1729 = vpop.f32.mrb[0].mxu0
      %v1730 = vadd.f32 %v1568, %v1729
      %v1731 = vpop.f32.mrb[0].mxu0
      %1732 = vmatprep.mubr.f32.mxu0 0.0
      %1733 = vmatmul.mubr.f32.gmra.mrb[0].mxu0 %v1601
      %v1734 = vpop.f32.mrb[0].mxu0
      %v1735 = vadd.f32 %v1568, %v1734
      %v1736 = vpop.f32.mrb[0].mxu0
      %1737 = vmatprep.mubr.f32.mxu0 0.0
      %1738 = vmatmul.mubr.f32.gmra.mrb[0].mxu0 %v1604
      %v1739 = vpop.f32.mrb[0].mxu0
      %v1740 = vadd.f32 %v1568, %v1739
      %v1741 = vpop.f32.mrb[0].mxu0
      %1742 = vmatprep.mubr.f32.mxu0 0.0
      %1743 = vmatmul.mubr.f32.gmra.mrb[0].mxu0 %v1607
      %v1744 = vpop.f32.mrb[0].mxu0
      %v1745 = vadd.f32 %v1568, %v1744
      %v1746 = vpop.f32.mrb[0].mxu0
      %1747 = vmatprep.mubr.f32.mxu0 0.0
      %1748 = vmatmul.mubr.f32.gmra.mrb[0].mxu0 %v1610
      %v1749 = vpop.f32.mrb[0].mxu0
      %v1750 = vadd.f32 %v1568, %v1749
      %v1751 = vpop.f32.mrb[0].mxu0
      %1752 = vmatprep.mubr.f32.mxu0 0.0
      %1753 = vmatmul.mubr.f32.gmra.mrb[0].mxu0 %v1613
      %v1754 = vpop.f32.mrb[0].mxu0
      %v1755 = vadd.f32 %v1568, %v1754
      %v1756 = vpop.f32.mrb[0].mxu0
      %1757 = vmatprep.mubr.f32.mxu0 0.0
      %1758 = vmatmul.mubr.f32.gmra.mrb[0].mxu0 %v1616
      %v1759 = vpop.f32.mrb[0].mxu0
      %v1760 = vadd.f32 %v1568, %v1759
      %v1761 = vpop.f32.mrb[0].mxu0
      %1762 = vdwg.mxu0
      %v1763 = vmax.f32 %v1685, 0.0
      %v1764 = vmax.f32 %v1690, 0.0
      %v1765 = vmax.f32 %v1695, 0.0
      %v1766 = vmax.f32 %v1700, 0.0
      %v1767 = vmax.f32 %v1705, 0.0
      %v1768 = vmax.f32 %v1710, 0.0
      %v1769 = vmax.f32 %v1715, 0.0
      %v1770 = vmax.f32 %v1720, 0.0
      %v1771 = vmax.f32 %v1725, 0.0
      %v1772 = vmax.f32 %v1730, 0.0
      %v1773 = vmax.f32 %v1735, 0.0
      %v1774 = vmax.f32 %v1740, 0.0
      %v1775 = vmax.f32 %v1745, 0.0
      %v1776 = vmax.f32 %v1750, 0.0
      %v1777 = vmax.f32 %v1755, 0.0
      %v1778 = vmax.f32 %v1760, 0.0
      %v1779 = vld [vmem:[%s13] sm:$0xff]
      %v1780 = vld [vmem:[%s13 + $0x8] sm:$0xff]
      %v1781 = vld [vmem:[%s13 + $0x10] sm:$0xff]
      %v1782 = vld [vmem:[%s13 + $0x18] sm:$0xff]
      %v1783 = vld [vmem:[#allocation3] sm:$0x1]
      %v1785 = vlaneseq
      %v1786 = vshrl.u32 %v1785, 7
      %v1787 = vsub.s32 0, %v1786
      %v1788 = vrot.slane %v1783, %v1787
      %v1791 = vsel %vm746, %v1763, 0
      %v1794 = vsel %vm746, %v1764, 0
      %v1797 = vsel %vm746, %v1765, 0
      %v1800 = vsel %vm746, %v1766, 0
      %v1803 = vsel %vm746, %v1767, 0
      %v1806 = vsel %vm746, %v1768, 0
      %v1809 = vsel %vm746, %v1769, 0
      %v1812 = vsel %vm746, %v1770, 0
      %v1815 = vsel %vm746, %v1771, 0
      %v1818 = vsel %vm746, %v1772, 0
      %v1821 = vsel %vm746, %v1773, 0
      %v1824 = vsel %vm746, %v1774, 0
      %v1827 = vsel %vm746, %v1775, 0
      %v1830 = vsel %vm746, %v1776, 0
      %v1833 = vsel %vm746, %v1777, 0
      %v1836 = vsel %vm746, %v1778, 0
      %1838 = vmatprep.subr.mxu0 0.0
      %1839 = vmatpush1.msra.mxu0 %v1779
      %1840 = vmatprep.subr.mxu0 0.0
      %1841 = vmatpush1.msra.mxu0 %v1780
      %1842 = vmatprep.subr.mxu0 0.0
      %1843 = vmatpush1.msra.mxu0 %v1781
      %1844 = vmatprep.subr.mxu0 0.0
      %1845 = vmatpush1.msra.mxu0 %v1782
      %1846 = vmatprep.subr.mxu0 0.0
      %1847 = vmatpush1.msra.mxu0 0.0
      %1848 = vmatprep.subr.mxu0 0.0
      %1849 = vmatpush1.msra.mxu0 0.0
      %1850 = vmatprep.subr.mxu0 0.0
      %1851 = vmatpush1.msra.mxu0 0.0
      %1852 = vmatprep.subr.mxu0 0.0
      %1853 = vmatpush1.msra.mxu0 0.0
      %1854 = vmatprep.subr.mxu0 0.0
      %1855 = vmatpush1.msra.mxu0 0.0
      %1856 = vmatprep.subr.mxu0 0.0
      %1857 = vmatpush1.msra.mxu0 0.0
      %1858 = vmatprep.subr.mxu0 0.0
      %1859 = vmatpush1.msra.mxu0 0.0
      %1860 = vmatprep.subr.mxu0 0.0
      %1861 = vmatpush1.msra.mxu0 0.0
      %1862 = vmatprep.subr.mxu0 0.0
      %1863 = vmatpush1.msra.mxu0 0.0
      %1864 = vmatprep.subr.mxu0 0.0
      %1865 = vmatpush1.msra.mxu0 0.0
      %1866 = vmatprep.subr.mxu0 0.0
      %1867 = vmatpush1.msra.mxu0 0.0
      %1868 = vmatprep.subr.mxu0 0.0
      %1869 = vmatpush1.msra.mxu0 0.0
      %1870 = vmatprep.subr.mxu0 0.0
      %1871 = vmatpush1.msra.mxu0 0.0
      %1872 = vmatprep.subr.mxu0 0.0
      %1873 = vmatpush1.msra.mxu0 0.0
      %1874 = vmatprep.subr.mxu0 0.0
      %1875 = vmatpush1.msra.mxu0 0.0
      %1876 = vmatprep.subr.mxu0 0.0
      %1877 = vmatpush1.msra.mxu0 0.0
      %1878 = vmatprep.subr.mxu0 0.0
      %1879 = vmatpush1.msra.mxu0 0.0
      %1880 = vmatprep.subr.mxu0 0.0
      %1881 = vmatpush1.msra.mxu0 0.0
      %1882 = vmatprep.subr.mxu0 0.0
      %1883 = vmatpush1.msra.mxu0 0.0
      %1884 = vmatprep.subr.mxu0 0.0
      %1885 = vmatpush1.msra.mxu0 0.0
      %1886 = vmatprep.subr.mxu0 0.0
      %1887 = vmatpush1.msra.mxu0 0.0
      %1888 = vmatprep.subr.mxu0 0.0
      %1889 = vmatpush1.msra.mxu0 0.0
      %1890 = vmatprep.subr.mxu0 0.0
      %1891 = vmatpush1.msra.mxu0 0.0
      %1892 = vmatprep.subr.mxu0 0.0
      %1893 = vmatpush1.msra.mxu0 0.0
      %1894 = vmatprep.subr.mxu0 0.0
      %1895 = vmatpush1.msra.mxu0 0.0
      %1896 = vmatprep.subr.mxu0 0.0
      %1897 = vmatpush1.msra.mxu0 0.0
      %1898 = vmatprep.subr.mxu0 0.0
      %1899 = vmatpush1.msra.mxu0 0.0
      %1900 = vmatprep.subr.mxu0 0.0
      %1901 = vmatpush1.msra.mxu0 0.0
      %1902 = vmatprep.mubr.f32.mxu0 0.0
      %1903 = vmatmul.mubr.f32.gmra.mrb[0].mxu0 %v1791
      %v1904 = vpop.f32.mrb[0].mxu0
      %v1905 = vadd.f32 %v1788, %v1904
      %v1906 = vpop.f32.mrb[0].mxu0
      %1907 = vmatprep.mubr.f32.mxu0 0.0
      %1908 = vmatmul.mubr.f32.gmra.mrb[0].mxu0 %v1794
      %v1909 = vpop.f32.mrb[0].mxu0
      %v1910 = vadd.f32 %v1788, %v1909
      %v1911 = vpop.f32.mrb[0].mxu0
      %1912 = vmatprep.mubr.f32.mxu0 0.0
      %1913 = vmatmul.mubr.f32.gmra.mrb[0].mxu0 %v1797
      %v1914 = vpop.f32.mrb[0].mxu0
      %v1915 = vadd.f32 %v1788, %v1914
      %v1916 = vpop.f32.mrb[0].mxu0
      %1917 = vmatprep.mubr.f32.mxu0 0.0
      %1918 = vmatmul.mubr.f32.gmra.mrb[0].mxu0 %v1800
      %v1919 = vpop.f32.mrb[0].mxu0
      %v1920 = vadd.f32 %v1788, %v1919
      %v1921 = vpop.f32.mrb[0].mxu0
      %1922 = vmatprep.mubr.f32.mxu0 0.0
      %1923 = vmatmul.mubr.f32.gmra.mrb[0].mxu0 %v1803
      %v1924 = vpop.f32.mrb[0].mxu0
      %v1925 = vadd.f32 %v1788, %v1924
      %v1926 = vpop.f32.mrb[0].mxu0
      %1927 = vmatprep.mubr.f32.mxu0 0.0
      %1928 = vmatmul.mubr.f32.gmra.mrb[0].mxu0 %v1806
      %v1929 = vpop.f32.mrb[0].mxu0
      %v1930 = vadd.f32 %v1788, %v1929
      %v1931 = vpop.f32.mrb[0].mxu0
      %1932 = vmatprep.mubr.f32.mxu0 0.0
      %1933 = vmatmul.mubr.f32.gmra.mrb[0].mxu0 %v1809
      %v1934 = vpop.f32.mrb[0].mxu0
      %v1935 = vadd.f32 %v1788, %v1934
      %v1936 = vpop.f32.mrb[0].mxu0
      %1937 = vmatprep.mubr.f32.mxu0 0.0
      %1938 = vmatmul.mubr.f32.gmra.mrb[0].mxu0 %v1812
      %v1939 = vpop.f32.mrb[0].mxu0
      %v1940 = vadd.f32 %v1788, %v1939
      %v1941 = vpop.f32.mrb[0].mxu0
      %1942 = vmatprep.mubr.f32.mxu0 0.0
      %1943 = vmatmul.mubr.f32.gmra.mrb[0].mxu0 %v1815
      %v1944 = vpop.f32.mrb[0].mxu0
      %v1945 = vadd.f32 %v1788, %v1944
      %v1946 = vpop.f32.mrb[0].mxu0
      %1947 = vmatprep.mubr.f32.mxu0 0.0
      %1948 = vmatmul.mubr.f32.gmra.mrb[0].mxu0 %v1818
      %v1949 = vpop.f32.mrb[0].mxu0
      %v1950 = vadd.f32 %v1788, %v1949
      %v1951 = vpop.f32.mrb[0].mxu0
      %1952 = vmatprep.mubr.f32.mxu0 0.0
      %1953 = vmatmul.mubr.f32.gmra.mrb[0].mxu0 %v1821
      %v1954 = vpop.f32.mrb[0].mxu0
      %v1955 = vadd.f32 %v1788, %v1954
      %v1956 = vpop.f32.mrb[0].mxu0
      %1957 = vmatprep.mubr.f32.mxu0 0.0
      %1958 = vmatmul.mubr.f32.gmra.mrb[0].mxu0 %v1824
      %v1959 = vpop.f32.mrb[0].mxu0
      %v1960 = vadd.f32 %v1788, %v1959
      %v1961 = vpop.f32.mrb[0].mxu0
      %1962 = vmatprep.mubr.f32.mxu0 0.0
      %1963 = vmatmul.mubr.f32.gmra.mrb[0].mxu0 %v1827
      %v1964 = vpop.f32.mrb[0].mxu0
      %v1965 = vadd.f32 %v1788, %v1964
      %v1966 = vpop.f32.mrb[0].mxu0
      %1967 = vmatprep.mubr.f32.mxu0 0.0
      %1968 = vmatmul.mubr.f32.gmra.mrb[0].mxu0 %v1830
      %v1969 = vpop.f32.mrb[0].mxu0
      %v1970 = vadd.f32 %v1788, %v1969
      %v1971 = vpop.f32.mrb[0].mxu0
      %1972 = vmatprep.mubr.f32.mxu0 0.0
      %1973 = vmatmul.mubr.f32.gmra.mrb[0].mxu0 %v1833
      %v1974 = vpop.f32.mrb[0].mxu0
      %v1975 = vadd.f32 %v1788, %v1974
      %v1976 = vpop.f32.mrb[0].mxu0
      %1977 = vmatprep.mubr.f32.mxu0 0.0
      %1978 = vmatmul.mubr.f32.gmra.mrb[0].mxu0 %v1836
      %v1979 = vpop.f32.mrb[0].mxu0
      %v1980 = vadd.f32 %v1788, %v1979
      %v1981 = vpop.f32.mrb[0].mxu0
      %1982 = vdwg.mxu0
      %vm1983 = vcmask 31744
      %1984 = vst.msk [vmem:[%s498] sm:$0xff] %vm1983, %v1206
      %1985 = vst.msk [vmem:[%s498 + $0x8] sm:$0xff] %vm1983, %v1207
      %1986 = vst.msk [vmem:[%s498 + $0x10] sm:$0xff] %vm1983, %v1208
      %1987 = vst.msk [vmem:[%s498 + $0x18] sm:$0xff] %vm1983, %v1209
      %1988 = vst.msk [vmem:[%s498 + $0x20] sm:$0xff] %vm1983, %v1210
      %1989 = vst.msk [vmem:[%s498 + $0x28] sm:$0xff] %vm1983, %v1211
      %1990 = vst.msk [vmem:[%s498 + $0x30] sm:$0xff] %vm1983, %v1212
      %1991 = vst.msk [vmem:[%s498 + $0x38] sm:$0xff] %vm1983, %v1213
      %1992 = vst.msk [vmem:[%s498 + $0x40] sm:$0xff] %vm1983, %v1214
      %1993 = vst.msk [vmem:[%s498 + $0x48] sm:$0xff] %vm1983, %v1215
      %1994 = vst.msk [vmem:[%s498 + $0x50] sm:$0xff] %vm1983, %v1216
      %1995 = vst.msk [vmem:[%s498 + $0x58] sm:$0xff] %vm1983, %v1217
      %1996 = vst.msk [vmem:[%s498 + $0x60] sm:$0xff] %vm1983, %v1218
      %1997 = vst.msk [vmem:[%s498 + $0x68] sm:$0xff] %vm1983, %v1219
      %1998 = vst.msk [vmem:[%s498 + $0x70] sm:$0xff] %vm1983, %v1220
      %1999 = vst.msk [vmem:[%s498 + $0x78] sm:$0xff] %vm1983, %v1221
      %2016 = vrot.lane.b32.xlu0 %v1905, 4
      %v2017 = vpop.permute.xlu0 %2016
      %2018 = vrot.lane.b32.xlu0 %v1910, 4
      %v2019 = vpop.permute.xlu0 %2018
      %2020 = vrot.lane.b32.xlu0 %v1915, 4
      %v2021 = vpop.permute.xlu0 %2020
      %2022 = vrot.lane.b32.xlu0 %v1920, 4
      %v2023 = vpop.permute.xlu0 %2022
      %2024 = vrot.lane.b32.xlu0 %v1925, 4
      %v2025 = vpop.permute.xlu0 %2024
      %2026 = vrot.lane.b32.xlu0 %v1930, 4
      %v2027 = vpop.permute.xlu0 %2026
      %2028 = vrot.lane.b32.xlu0 %v1935, 4
      %v2029 = vpop.permute.xlu0 %2028
      %2030 = vrot.lane.b32.xlu0 %v1940, 4
      %v2031 = vpop.permute.xlu0 %2030
      %2032 = vrot.lane.b32.xlu0 %v1945, 4
      %v2033 = vpop.permute.xlu0 %2032
      %2034 = vrot.lane.b32.xlu0 %v1950, 4
      %v2035 = vpop.permute.xlu0 %2034
      %2036 = vrot.lane.b32.xlu0 %v1955, 4
      %v2037 = vpop.permute.xlu0 %2036
      %2038 = vrot.lane.b32.xlu0 %v1960, 4
      %v2039 = vpop.permute.xlu0 %2038
      %2040 = vrot.lane.b32.xlu0 %v1965, 4
      %v2041 = vpop.permute.xlu0 %2040
      %2042 = vrot.lane.b32.xlu0 %v1970, 4
      %v2043 = vpop.permute.xlu0 %2042
      %2044 = vrot.lane.b32.xlu0 %v1975, 4
      %v2045 = vpop.permute.xlu0 %2044
      %2046 = vrot.lane.b32.xlu0 %v1980, 4
      %v2047 = vpop.permute.xlu0 %2046
      %vm2064 = vcmask 39968
      %2065 = vst.msk [vmem:[%s498] sm:$0xff] %vm2064, %v2017
      %2066 = vst.msk [vmem:[%s498 + $0x8] sm:$0xff] %vm2064, %v2019
      %2067 = vst.msk [vmem:[%s498 + $0x10] sm:$0xff] %vm2064, %v2021
      %2068 = vst.msk [vmem:[%s498 + $0x18] sm:$0xff] %vm2064, %v2023
      %2069 = vst.msk [vmem:[%s498 + $0x20] sm:$0xff] %vm2064, %v2025
      %2070 = vst.msk [vmem:[%s498 + $0x28] sm:$0xff] %vm2064, %v2027
      %2071 = vst.msk [vmem:[%s498 + $0x30] sm:$0xff] %vm2064, %v2029
      %2072 = vst.msk [vmem:[%s498 + $0x38] sm:$0xff] %vm2064, %v2031
      %2073 = vst.msk [vmem:[%s498 + $0x40] sm:$0xff] %vm2064, %v2033
      %2074 = vst.msk [vmem:[%s498 + $0x48] sm:$0xff] %vm2064, %v2035
      %2075 = vst.msk [vmem:[%s498 + $0x50] sm:$0xff] %vm2064, %v2037
      %2076 = vst.msk [vmem:[%s498 + $0x58] sm:$0xff] %vm2064, %v2039
      %2077 = vst.msk [vmem:[%s498 + $0x60] sm:$0xff] %vm2064, %v2041
      %2078 = vst.msk [vmem:[%s498 + $0x68] sm:$0xff] %vm2064, %v2043
      %2079 = vst.msk [vmem:[%s498 + $0x70] sm:$0xff] %vm2064, %v2045
      %2080 = vst.msk [vmem:[%s498 + $0x78] sm:$0xff] %vm2064, %v2047
      %s2081 = smul.u32 16, %s28
      %p2082 = scmp.lt.s32.totalorder %s2081, 31
      %s2083 = scalar_select %p2082, %s2081, 31
      %s2084 = smul.addr %s2083, 8
      %s2085 = scalar_lea.vmem %s15, %s2084
      // Predicated region
      $region81: #{tpu_custom_call.1} parent=79 // pred_check
        %p2086 = pneg %p366
      $region82: #{tpu_custom_call.1} parent=79 // pred_check_branch
        %2088 = sbr.rel (%p2086) target = $region84
      $region83: #{tpu_custom_call.1} parent=79 // pred_region
        %s2089 = smul.u32 16, %s28
      $region84: #{tpu_custom_call.1} parent=79 // pred_fallthru
        _
    $region80: #{tpu_custom_call.1} parent=5 // pred_fallthru
      _
    %p2090 = scmp.le.s32.totalorder 2, %s23
    // Predicated region
    $region85: #{tpu_custom_call.1} parent=5 // pred_check
      %p2091 = pneg %p2090
    $region86: #{tpu_custom_call.1} parent=5 // pred_check_branch
      %2093 = sbr.rel (%p2091) target = $region88
    $region87: #{tpu_custom_call.1} parent=5 // pred_region
      %s2094 = ssub.s32 %s23, 2
      // Predicated region
      $region89: #{tpu_custom_call.1} parent=87 // pred_check
        %p2095 = pneg %p372
      $region90: #{tpu_custom_call.1} parent=87 // pred_check_branch
        %2097 = sbr.rel (%p2095) target = $region92
      $region91: #{tpu_custom_call.1} parent=87 // pred_region
        %s2098 = smul.u32 16, %s29
        %p2099 = scmp.lt.s32.totalorder %s2098, 31
        %s2100 = scalar_select %p2099, %s2098, 31
        %s2101 = smul.addr %s2100, 8
        %s2102 = scalar_lea.vmem %s15, %s2101
      $region92: #{tpu_custom_call.1} parent=87 // pred_fallthru
        _
    $region88: #{tpu_custom_call.1} parent=5 // pred_fallthru
      _
  $region6: #{tpu_custom_call.1} parent=0 // loop_footer
    %s27 = sadd.s32 1, %s23
  $region7: #{tpu_custom_call.1} parent=0 // loop_footer_branch
    %22 = sbr.rel target = $region3
  $region8: #{tpu_custom_call.1} parent=0 // loop_exit
    _

</llo_original>
